<compile_context>
chip_gen: v7x
topology: tpu7x:2x2x1
jax: 0.10.0
libtpu: 0.0.40
codegen_flags: <defaults>
</compile_context>

<pallas_src>
import functools

import jax
import jax.numpy as jnp
import numpy as np
from jax.experimental import pallas as pl
from jax.experimental.pallas import tpu as pltpu

EPS_VAR = 1e-4
BN_EPS = 1e-5
LOG_2PI = float(np.log(2.0 * np.pi))
LP = 128  # latent dim padded to one full lane width


# --------------------------------------------------------------------------- #
# Kernels
# --------------------------------------------------------------------------- #
def _encode_kernel(x_ref, noise_ref, aux_ref,
                   w_enc_ref, b_enc_ref, w_lat_ref, b_lat_ref,
                   lat_ref, h_acc, *, lp):
    """Encoder + latent heads.  Grid = (batch tiles, G tiles[arbitrary])."""
    j = pl.program_id(1)

    @pl.when(j == 0)
    def _():
        h_acc[...] = jnp.zeros_like(h_acc)

    # accumulate the encoder matmul over the G (reduction) tiles
    xl = jnp.log(x_ref[...] + 1.0)
    h_acc[...] += jnp.dot(xl.astype(jnp.bfloat16), w_enc_ref[...],
                          preferred_element_type=jnp.float32)

    @pl.when(j == pl.num_programs(1) - 1)
    def _():
        h = jnp.maximum(h_acc[...] + b_enc_ref[...], 0.0)          # [tb, H]

        # fused latent heads: [mu | logvar], each zero-padded to lp lanes
        lat = jnp.dot(h.astype(jnp.bfloat16), w_lat_ref[...],
                      preferred_element_type=jnp.float32) + b_lat_ref[...]
        q_mu = lat[:, :lp]                          # pad lanes are exactly 0
        q_var = jnp.exp(lat[:, lp:]) + EPS_VAR      # pad lanes = 1 + eps
        z = q_mu + jnp.sqrt(q_var) * noise_ref[...]  # noise pads 0 -> z pads 0

        # KL( N(q_mu, sqrt(q_var)) || N(0,1) ), real latent lanes only
        mask = aux_ref[0:1, :]                       # [1, lp] 1.0 on real lanes
        kslot = aux_ref[1:2, :]                      # [1, lp] one-hot pad lane
        kl = ((-0.5 * jnp.log(q_var) + 0.5 * (q_var + q_mu * q_mu) - 0.5)
              * mask).sum(axis=-1, keepdims=True)    # [tb, 1]

        # lane-dense slab: [ q_mu (kl folded into a pad lane) | q_var | z ]
        lat_ref[...] = jnp.concatenate([q_mu + kl * kslot, q_var, z], axis=-1)


def _decode_kernel(z_ref, x_ref,
                   w_dec_ref, b_dec_ref,
                   w_scale_ref, b_scale_ref,
                   w_rate_ref, b_rate_ref,
                   w_drop_ref, b_drop_ref,
                   scale_ref, rate_ref, drop_ref, recon_ref,
                   d_sc, recon_acc):
    """Decoder FC + output heads + gaussian NLL.  Grid = (batch, G[arbitrary])."""
    j = pl.program_id(1)

    @pl.when(j == 0)
    def _():
        d = jnp.dot(z_ref[...].astype(jnp.bfloat16), w_dec_ref[...],
                    preferred_element_type=jnp.float32) + b_dec_ref[...]
        d_sc[...] = jnp.maximum(d, 0.0)              # decoder FCLayer (BN folded)
        recon_acc[...] = jnp.zeros_like(recon_acc)

    d16 = d_sc[...].astype(jnp.bfloat16)             # [tb, H]
    scale = jnp.dot(d16, w_scale_ref[...],
                    preferred_element_type=jnp.float32) + b_scale_ref[...]
    rate = jnp.dot(d16, w_rate_ref[...],
                   preferred_element_type=jnp.float32) + b_rate_ref[...]
    drop = jnp.dot(d16, w_drop_ref[...],
                   preferred_element_type=jnp.float32) + b_drop_ref[...]

    # gaussian reconstruction loss ('g') on RAW counts x, f32 math
    x = x_ref[...]
    diff = x - scale
    nll = 0.5 * (LOG_2PI + rate) + diff * diff * (0.5 * jnp.exp(-rate))
    recon_acc[...] += nll.sum(axis=-1, keepdims=True)

    # lane-dense, bf16 writeback of the heads (loss math above stayed f32)
    scale_ref[...] = scale.astype(scale_ref.dtype)
    rate_ref[...] = rate.astype(rate_ref.dtype)
    drop_ref[...] = drop.astype(drop_ref.dtype)

    @pl.when(j == pl.num_programs(1) - 1)
    def _():
        recon_ref[...] = recon_acc[...]


# --------------------------------------------------------------------------- #
# pallas_call builders
# --------------------------------------------------------------------------- #
def _tile_bytes(shape, dtype):
    dims = list(shape)
    dims[-1] = -(-dims[-1] // 128) * 128
    if len(dims) >= 2:
        dims[-2] = -(-dims[-2] // 8) * 8
    n = 1
    for d in dims:
        n *= int(d)
    return n * np.dtype(dtype).itemsize


def _vmem_limit(footprint_bytes):
    lim = int(footprint_bytes * 1.25) + (4 << 20)
    return int(max(16 << 20, min(128 << 20, lim)))


def _const_spec(shape, single):
    if single:
        return pl.BlockSpec(shape, lambda i, j: (0, 0),
                            pipeline_mode=pl.Buffered(1))
    return pl.BlockSpec(shape, lambda i, j: (0, 0))


def _build_encode(B, G, H, lp, tb, tg, single):
    grid = (B // tb, G // tg)
    in_specs = [
        pl.BlockSpec((tb, tg), lambda i, j: (i, j)),        # x (streamed over G)
        pl.BlockSpec((tb, lp), lambda i, j: (i, 0)),        # noise (padded)
        _const_spec((2, lp), single),                       # [kl mask; kl slot]
        pl.BlockSpec((tg, H), lambda i, j: (j, 0)),         # w_enc (streamed)
        _const_spec((1, H), single),                        # b_enc
        _const_spec((H, 2 * lp), single),                   # w_lat [mu|logvar]
        _const_spec((1, 2 * lp), single),                   # b_lat
    ]
    out_specs = pl.BlockSpec((tb, 3 * lp), lambda i, j: (i, 0))
    out_shape = jax.ShapeDtypeStruct((B, 3 * lp), jnp.float32)

    nbw = 1 if single else 2
    vmem = (2 * _tile_bytes((tb, tg), np.float32)
            + 2 * _tile_bytes((tb, lp), np.float32)
            + nbw * _tile_bytes((2, lp), np.float32)
            + 2 * _tile_bytes((tg, H), jnp.bfloat16)
            + nbw * (_tile_bytes((1, H), np.float32)
                     + _tile_bytes((H, 2 * lp), jnp.bfloat16)
                     + _tile_bytes((1, 2 * lp), np.float32))
            + 2 * _tile_bytes((tb, 3 * lp), np.float32)
            + _tile_bytes((tb, H), np.float32))

    return pl.pallas_call(
        functools.partial(_encode_kernel, lp=lp),
        out_shape=out_shape,
        grid_spec=pltpu.PrefetchScalarGridSpec(
            num_scalar_prefetch=0, grid=grid,
            in_specs=in_specs, out_specs=out_specs,
            scratch_shapes=[pltpu.VMEM((tb, H), jnp.float32)]),
        compiler_params=pltpu.CompilerParams(
            dimension_semantics=("parallel", "arbitrary"),
            vmem_limit_bytes=_vmem_limit(vmem)),
    )


def _build_decode(B, G, H, lp, tb, tg, single, head_dtype):
    grid = (B // tb, G // tg)
    in_specs = [
        pl.BlockSpec((tb, lp), lambda i, j: (i, 2)),        # z view of lat slab
        pl.BlockSpec((tb, tg), lambda i, j: (i, j)),        # raw x (recon loss)
        _const_spec((lp, H), single),                       # w_dec (BN folded)
        _const_spec((1, H), single),                        # b_dec
        pl.BlockSpec((H, tg), lambda i, j: (0, j)),         # w_scale (streamed)
        pl.BlockSpec((1, tg), lambda i, j: (0, j)),         # b_scale
        pl.BlockSpec((H, tg), lambda i, j: (0, j)),         # w_rate
        pl.BlockSpec((1, tg), lambda i, j: (0, j)),         # b_rate
        pl.BlockSpec((H, tg), lambda i, j: (0, j)),         # w_drop
        pl.BlockSpec((1, tg), lambda i, j: (0, j)),         # b_drop
    ]
    out_specs = (
        pl.BlockSpec((tb, tg), lambda i, j: (i, j)),        # px_sm_scale
        pl.BlockSpec((tb, tg), lambda i, j: (i, j)),        # px_sm_rate
        pl.BlockSpec((tb, tg), lambda i, j: (i, j)),        # px_sm_dropout
        pl.BlockSpec((tb, 1), lambda i, j: (i, 0)),         # recon loss
    )
    out_shape = (
        jax.ShapeDtypeStruct((B, G), head_dtype),
        jax.ShapeDtypeStruct((B, G), head_dtype),
        jax.ShapeDtypeStruct((B, G), head_dtype),
        jax.ShapeDtypeStruct((B, 1), jnp.float32),
    )

    nbw = 1 if single else 2
    vmem = (2 * _tile_bytes((tb, lp), np.float32)
            + 2 * _tile_bytes((tb, tg), np.float32)
            + nbw * (_tile_bytes((lp, H), jnp.bfloat16)
                     + _tile_bytes((1, H), np.float32))
            + 3 * 2 * (_tile_bytes((H, tg), jnp.bfloat16)
                       + _tile_bytes((1, tg), np.float32))
            + 3 * 2 * _tile_bytes((tb, tg), head_dtype)
            + 2 * _tile_bytes((tb, 1), np.float32)
            + _tile_bytes((tb, H), np.float32)
            + _tile_bytes((tb, 1), np.float32))

    return pl.pallas_call(
        _decode_kernel,
        out_shape=out_shape,
        grid_spec=pltpu.PrefetchScalarGridSpec(
            num_scalar_prefetch=0, grid=grid,
            in_specs=in_specs, out_specs=out_specs,
            scratch_shapes=[pltpu.VMEM((tb, H), jnp.float32),
                            pltpu.VMEM((tb, 1), jnp.float32)]),
        compiler_params=pltpu.CompilerParams(
            dimension_semantics=("parallel", "arbitrary"),
            vmem_limit_bytes=_vmem_limit(vmem)),
    )


# --------------------------------------------------------------------------- #
# Wrapper
# --------------------------------------------------------------------------- #
def _pick_tile(dim, target):
    if dim <= 128:
        return dim
    t = min(target, dim)
    t -= t % 128
    while t >= 128:
        if dim % t == 0:
            return t
        t -= 128
    return dim


def cvae_sm_forward(x, noise, kp, *, n_latent, tb=None, tg=None,
                    head_dtype=jnp.bfloat16):
    """Returns (q_mu, q_var, z, px_sm_scale, px_sm_rate, px_sm_dropout, kl, recon)."""
    B, G = x.shape
    H = kp["w_enc"].shape[1]
    lp = kp["w_lat"].shape[1] // 2
    assert n_latent + 1 < lp, "need a spare pad lane for the folded KL value"

    if tb is None:
        tb = min(B, 256)          # MXU K/N is 256 on v6e/v7x; M is streamed
    assert B % tb == 0
    if tg is None:
        tg = _pick_tile(G, 2048)  # keep each G tile well under the VMEM budget
    assert G % tg == 0

    # zero-pad rsample noise [B, L] -> [B, lp] (pad lanes of z stay exactly 0)
    noise_p = jnp.zeros((B, lp), jnp.float32).at[:, :n_latent].set(noise)

    # precomputed KL lane-mask + kl-slot one-hot (no in-kernel iota)
    lane = np.arange(lp, dtype=np.int64)
    aux = jnp.asarray(np.stack([(lane < n_latent).astype(np.float32),
                                (lane == n_latent).astype(np.float32)], axis=0))

    def run(single):
        enc = _build_encode(B, G, H, lp, tb, tg, single)
        lat = enc(x, noise_p, aux,
                  kp["w_enc"], kp["b_enc"], kp["w_lat"], kp["b_lat"])
        dec = _build_decode(B, G, H, lp, tb, tg, single, head_dtype)
        scale, rate, drop, recon = dec(
            lat, x,
            kp["w_dec"], kp["b_dec"],
            kp["w_scale"], kp["b_scale"],
            kp["w_rate"], kp["b_rate"],
            kp["w_drop"], kp["b_drop"])
        return lat, scale, rate, drop, recon

    try:
        lat, scale, rate, drop, recon = run(single=True)
    except Exception:
        # Fallback for Pallas builds that reject pl.Buffered(1) on inputs.
        lat, scale, rate, drop, recon = run(single=False)

    q_mu = lat[:, :n_latent]
    kl = lat[:, n_latent:n_latent + 1]          # folded into a pad lane
    q_var = lat[:, lp:lp + n_latent]
    z = lat[:, 2 * lp:2 * lp + n_latent]
    return q_mu, q_var, z, scale, rate, drop, kl, recon


# --------------------------------------------------------------------------- #
# Parameters (synthetic) + one-time fold/fuse/pad/bf16 transform
# --------------------------------------------------------------------------- #
def init_raw_params(key, G, H, L):
    """Deterministic synthetic init of module parameters (Linear + eval-mode BN)."""
    ks = jax.random.split(key, 16)

    def lin_w(k, fan_in, shape):
        return jax.random.normal(k, shape, jnp.float32) / jnp.sqrt(fan_in)

    def lin_b(k, n):
        return 0.01 * jax.random.normal(k, (1, n), jnp.float32)

    def bn(seed, n):
        # running_mean=0, running_var=1 -> folded eval-BN scale/shift
        gamma = 1.0 + 0.05 * jnp.sin(jnp.arange(n, dtype=jnp.float32) + seed)
        beta = 0.01 * jnp.cos(jnp.arange(n, dtype=jnp.float32) + seed)
        s = gamma / jnp.sqrt(1.0 + BN_EPS)
        return s.reshape(1, n), beta.reshape(1, n)

    bn1_s, bn1_b = bn(0.0, H)
    bn2_s, bn2_b = bn(1.0, H)
    return dict(
        w_enc=lin_w(ks[0], G, (G, H)), b_enc=lin_b(ks[1], H), bn1_s=bn1_s, bn1_b=bn1_b,
        w_mu=lin_w(ks[2], H, (H, L)), b_mu=lin_b(ks[3], L),
        w_var=lin_w(ks[4], H, (H, L)), b_var=lin_b(ks[5], L),
        w_dec=lin_w(ks[6], L, (L, H)), b_dec=lin_b(ks[7], H), bn2_s=bn2_s, bn2_b=bn2_b,
        w_scale=lin_w(ks[8], H, (H, G)), b_scale=lin_b(ks[9], G),
        w_rate=lin_w(ks[10], H, (H, G)), b_rate=lin_b(ks[11], G),
        w_drop=lin_w(ks[12], H, (H, G)), b_drop=lin_b(ks[13], G),
    )


def prepare_kernel_params(p, L, lp=LP):
    """Fold eval-BN into Linear, fuse latent heads, zero-pad latent dim, cast bf16."""
    H = p["w_enc"].shape[1]

    w_enc = p["w_enc"] * p["bn1_s"]
    b_enc = p["b_enc"] * p["bn1_s"] + p["bn1_b"]
    w_dec = p["w_dec"] * p["bn2_s"]
    b_dec = p["b_dec"] * p["bn2_s"] + p["bn2_b"]

    w_mu_p = jnp.zeros((H, lp), jnp.float32).at[:, :L].set(p["w_mu"])
    w_var_p = jnp.zeros((H, lp), jnp.float32).at[:, :L].set(p["w_var"])
    b_mu_p = jnp.zeros((1, lp), jnp.float32).at[:, :L].set(p["b_mu"])
    b_var_p = jnp.zeros((1, lp), jnp.float32).at[:, :L].set(p["b_var"])
    w_lat = jnp.concatenate([w_mu_p, w_var_p], axis=1)     # [H, 2*lp]
    b_lat = jnp.concatenate([b_mu_p, b_var_p], axis=1)     # [1, 2*lp]
    w_dec_p = jnp.zeros((lp, H), jnp.float32).at[:L, :].set(w_dec)

    return dict(
        w_enc=w_enc.astype(jnp.bfloat16), b_enc=b_enc.astype(jnp.float32),
        w_lat=w_lat.astype(jnp.bfloat16), b_lat=b_lat.astype(jnp.float32),
        w_dec=w_dec_p.astype(jnp.bfloat16), b_dec=b_dec.astype(jnp.float32),
        w_scale=p["w_scale"].astype(jnp.bfloat16), b_scale=p["b_scale"].astype(jnp.float32),
        w_rate=p["w_rate"].astype(jnp.bfloat16), b_rate=p["b_rate"].astype(jnp.float32),
        w_drop=p["w_drop"].astype(jnp.bfloat16), b_drop=p["b_drop"].astype(jnp.float32),
    )


# --------------------------------------------------------------------------- #
# Pure-JAX reference (same folded / fused / padded bf16 params)
# --------------------------------------------------------------------------- #
def reference_forward(x, noise, kp, *, n_latent, head_dtype=jnp.bfloat16):
    B, G = x.shape
    lp = kp["w_lat"].shape[1] // 2
    noise_p = jnp.zeros((B, lp), jnp.float32).at[:, :n_latent].set(noise)

    xl = jnp.log(x + 1.0).astype(jnp.bfloat16)
    h = jnp.maximum(jnp.dot(xl, kp["w_enc"],
                            preferred_element_type=jnp.float32) + kp["b_enc"], 0.0)
    lat = jnp.dot(h.astype(jnp.bfloat16), kp["w_lat"],
                  preferred_element_type=jnp.float32) + kp["b_lat"]
    q_mu = lat[:, :lp]
    q_var = jnp.exp(lat[:, lp:]) + EPS_VAR
    z = q_mu + jnp.sqrt(q_var) * noise_p
    valid = (jnp.arange(lp) < n_latent).astype(jnp.float32)
    kl = ((-0.5 * jnp.log(q_var) + 0.5 * (q_var + q_mu ** 2) - 0.5) * valid
          ).sum(-1, keepdims=True)

    d = jnp.maximum(jnp.dot(z.astype(jnp.bfloat16), kp["w_dec"],
                            preferred_element_type=jnp.float32) + kp["b_dec"], 0.0)
    d16 = d.astype(jnp.bfloat16)
    scale = jnp.dot(d16, kp["w_scale"], preferred_element_type=jnp.float32) + kp["b_scale"]
    rate = jnp.dot(d16, kp["w_rate"], preferred_element_type=jnp.float32) + kp["b_rate"]
    drop = jnp.dot(d16, kp["w_drop"], preferred_element_type=jnp.float32) + kp["b_drop"]

    nll = 0.5 * (LOG_2PI + rate) + (x - scale) ** 2 * (0.5 * jnp.exp(-rate))
    recon = nll.sum(-1, keepdims=True)
    return (q_mu[:, :n_latent], q_var[:, :n_latent], z[:, :n_latent],
            scale.astype(head_dtype), rate.astype(head_dtype), drop.astype(head_dtype),
            kl, recon)


# --------------------------------------------------------------------------- #
if __name__ == "__main__":
    # small shapes consistent with the module: in_dim (genes) = 256,
    # hidden_stacks=[128], n_latent=10, batch = 16
    B, G, H, L = 16, 256, 128, 10

    key = jax.random.PRNGKey(0)
    k_x, k_noise, k_p = jax.random.split(key, 3)
    x = jax.random.uniform(k_x, (B, G), jnp.float32, minval=0.0, maxval=5.0)  # counts-like
    noise = jax.random.normal(k_noise, (B, L), jnp.float32)                   # rsample eps

    raw = init_raw_params(k_p, G, H, L)
    kparams = prepare_kernel_params(raw, L)    # one-time fold/fuse/pad/bf16

    # tg=128 -> 2 G-tiles even at toy scale, exercising the tiled accumulation path
    outs = cvae_sm_forward(x, noise, kparams, n_latent=L, tg=128)
    outs = jax.block_until_ready(outs)

    refs = reference_forward(x, noise, kparams, n_latent=L)
    # f32 outputs tight; bf16 head outputs and the G-summed recon get bf16-scale tolerances
    tols = [(2e-3, 2e-3)] * 3 + [(2e-2, 2e-2)] * 3 + [(2e-3, 2e-3), (5e-3, 1e-2)]
    for o, r, (rt, at) in zip(outs, refs, tols):
        np.testing.assert_allclose(np.asarray(o, dtype=np.float32),
                                   np.asarray(r, dtype=np.float32),
                                   rtol=rt, atol=at)

    print("KERNEL_OK")
</pallas_src>

<mosaic_0001>
module attributes {stable_mosaic.version = 11 : i64} {
  func.func @_encode_kernel(%arg0: i32, %arg1: i32, %arg2: memref<16x128xf32, #tpu.memory_space<vmem>>, %arg3: memref<16x128xf32, #tpu.memory_space<vmem>>, %arg4: memref<2x128xf32, #tpu.memory_space<vmem>>, %arg5: memref<128x128xbf16, #tpu.memory_space<vmem>>, %arg6: memref<1x128xf32, #tpu.memory_space<vmem>>, %arg7: memref<128x256xbf16, #tpu.memory_space<vmem>>, %arg8: memref<1x256xf32, #tpu.memory_space<vmem>>, %arg9: memref<16x384xf32, #tpu.memory_space<vmem>>, %arg10: memref<16x128xf32, #tpu.memory_space<vmem>>) attributes {dimension_semantics = [#tpu.dimension_semantics<parallel>, #tpu.dimension_semantics<arbitrary>], iteration_bounds = array<i64: 1, 2>, scalar_prefetch = 0 : i64, scratch_operands = 1 : i64, tpu.core_type = #tpu.core_type<tc>, window_params = [{transform_indices = @transform_0, window_bounds = array<i64: 16, 128>}, {transform_indices = @transform_1, window_bounds = array<i64: 16, 128>}, {pipeline_mode = #tpu.pipeline_mode<synchronous>, transform_indices = @transform_2, window_bounds = array<i64: 2, 128>}, {transform_indices = @transform_3, window_bounds = array<i64: 128, 128>}, {pipeline_mode = #tpu.pipeline_mode<synchronous>, transform_indices = @transform_4, window_bounds = array<i64: 1, 128>}, {pipeline_mode = #tpu.pipeline_mode<synchronous>, transform_indices = @transform_5, window_bounds = array<i64: 128, 256>}, {pipeline_mode = #tpu.pipeline_mode<synchronous>, transform_indices = @transform_6, window_bounds = array<i64: 1, 256>}, {transform_indices = @transform_7, window_bounds = array<i64: 16, 384>}]} {
    %c0_i32 = arith.constant 0 : i32
    %0 = arith.cmpi eq, %arg1, %c0_i32 : i32
    %1 = arith.extui %0 : i1 to i32
    %c0_i32_0 = arith.constant 0 : i32
    %2 = arith.cmpi ne, %1, %c0_i32_0 : i32
    scf.if %2 {
      %cst_10 = arith.constant 0.000000e+00 : f32
      %16 = vector.broadcast %cst_10 : f32 to vector<16x128xf32>
      %c0_11 = arith.constant 0 : index
      %c0_12 = arith.constant 0 : index
      %17 = vector.load %arg10[%c0_11, %c0_12] : memref<16x128xf32, #tpu.memory_space<vmem>>, vector<16x128xf32>
      tpu.vector_store %arg10[%c0_11, %c0_12], %16 {strides = array<i32>} : memref<16x128xf32, #tpu.memory_space<vmem>>, vector<16x128xf32>,
    } else {
    }
    %c0 = arith.constant 0 : index
    %c0_1 = arith.constant 0 : index
    %3 = vector.load %arg2[%c0, %c0_1] : memref<16x128xf32, #tpu.memory_space<vmem>>, vector<16x128xf32>
    %cst = arith.constant 1.000000e+00 : f32
    %4 = vector.broadcast %cst : f32 to vector<16x128xf32>
    %5 = arith.addf %3, %4 : vector<16x128xf32>
    %6 = math.log %5 : vector<16x128xf32>
    %c0_2 = arith.constant 0 : index
    %c0_3 = arith.constant 0 : index
    %7 = vector.load %arg10[%c0_2, %c0_3] : memref<16x128xf32, #tpu.memory_space<vmem>>, vector<16x128xf32>
    %8 = arith.truncf %6 : vector<16x128xf32> to vector<16x128xbf16>
    %c0_4 = arith.constant 0 : index
    %c0_5 = arith.constant 0 : index
    %9 = vector.load %arg5[%c0_4, %c0_5] : memref<128x128xbf16, #tpu.memory_space<vmem>>, vector<128x128xbf16>
    %cst_6 = arith.constant dense<0.000000e+00> : vector<16x128xf32>
    %10 = tpu.matmul %8, %9, %cst_6 {dimension_numbers = #tpu.dot_dimension_numbers<[1], [0], [0], [1], [0, 0, 1, 1], [], []>} : vector<16x128xbf16>, vector<128x128xbf16>, vector<16x128xf32> -> vector<16x128xf32>
    %11 = arith.addf %7, %10 : vector<16x128xf32>
    %c0_7 = arith.constant 0 : index
    %c0_8 = arith.constant 0 : index
    %12 = vector.load %arg10[%c0_7, %c0_8] : memref<16x128xf32, #tpu.memory_space<vmem>>, vector<16x128xf32>
    tpu.vector_store %arg10[%c0_7, %c0_8], %11 {strides = array<i32>} : memref<16x128xf32, #tpu.memory_space<vmem>>, vector<16x128xf32>,
    %c1_i32 = arith.constant 1 : i32
    %13 = arith.cmpi eq, %arg1, %c1_i32 : i32
    %14 = arith.extui %13 : i1 to i32
    %c0_i32_9 = arith.constant 0 : i32
    %15 = arith.cmpi ne, %14, %c0_i32_9 : i32
    scf.if %15 {
      %c0_10 = arith.constant 0 : index
      %c0_11 = arith.constant 0 : index
      %16 = vector.load %arg10[%c0_10, %c0_11] : memref<16x128xf32, #tpu.memory_space<vmem>>, vector<16x128xf32>
      %c0_12 = arith.constant 0 : index
      %c0_13 = arith.constant 0 : index
      %17 = vector.load %arg6[%c0_12, %c0_13] : memref<1x128xf32, #tpu.memory_space<vmem>>, vector<1x128xf32>
      %18 = vector.broadcast %17 : vector<1x128xf32> to vector<16x128xf32>
      %19 = arith.addf %16, %18 : vector<16x128xf32>
      %cst_14 = arith.constant 0.000000e+00 : f32
      %20 = vector.broadcast %cst_14 : f32 to vector<16x128xf32>
      %21 = arith.maximumf %19, %20 : vector<16x128xf32>
      %22 = arith.truncf %21 : vector<16x128xf32> to vector<16x128xbf16>
      %c0_15 = arith.constant 0 : index
      %c0_16 = arith.constant 0 : index
      %23 = vector.load %arg7[%c0_15, %c0_16] : memref<128x256xbf16, #tpu.memory_space<vmem>>, vector<128x256xbf16>
      %cst_17 = arith.constant dense<0.000000e+00> : vector<16x256xf32>
      %24 = tpu.matmul %22, %23, %cst_17 {dimension_numbers = #tpu.dot_dimension_numbers<[1], [0], [0], [1], [0, 0, 1, 1], [], []>} : vector<16x128xbf16>, vector<128x256xbf16>, vector<16x256xf32> -> vector<16x256xf32>
      %c0_18 = arith.constant 0 : index
      %c0_19 = arith.constant 0 : index
      %25 = vector.load %arg8[%c0_18, %c0_19] : memref<1x256xf32, #tpu.memory_space<vmem>>, vector<1x256xf32>
      %26 = vector.broadcast %25 : vector<1x256xf32> to vector<16x256xf32>
      %27 = arith.addf %24, %26 : vector<16x256xf32>
      %28 = vector.extract_strided_slice %27 {offsets = [0, 0], sizes = [16, 128], strides = [1, 1]} : vector<16x256xf32> to vector<16x128xf32>
      %29 = vector.extract_strided_slice %27 {offsets = [0, 128], sizes = [16, 128], strides = [1, 1]} : vector<16x256xf32> to vector<16x128xf32>
      %30 = math.exp %29 : vector<16x128xf32>
      %cst_20 = arith.constant 9.99999974E-5 : f32
      %31 = vector.broadcast %cst_20 : f32 to vector<16x128xf32>
      %32 = arith.addf %30, %31 : vector<16x128xf32>
      %33 = math.sqrt %32 : vector<16x128xf32>
      %c0_21 = arith.constant 0 : index
      %c0_22 = arith.constant 0 : index
      %34 = vector.load %arg3[%c0_21, %c0_22] : memref<16x128xf32, #tpu.memory_space<vmem>>, vector<16x128xf32>
      %35 = arith.mulf %33, %34 : vector<16x128xf32>
      %36 = arith.addf %28, %35 : vector<16x128xf32>
      %c0_23 = arith.constant 0 : index
      %c0_24 = arith.constant 0 : index
      %37 = vector.load %arg4[%c0_23, %c0_24] : memref<2x128xf32, #tpu.memory_space<vmem>>, vector<1x128xf32>
      %c1 = arith.constant 1 : index
      %c0_25 = arith.constant 0 : index
      %38 = vector.load %arg4[%c1, %c0_25] : memref<2x128xf32, #tpu.memory_space<vmem>>, vector<1x128xf32>
      %39 = math.log %32 : vector<16x128xf32>
      %cst_26 = arith.constant -5.000000e-01 : f32
      %40 = vector.broadcast %cst_26 : f32 to vector<16x128xf32>
      %41 = arith.mulf %40, %39 : vector<16x128xf32>
      %42 = arith.mulf %28, %28 : vector<16x128xf32>
      %43 = arith.addf %32, %42 : vector<16x128xf32>
      %cst_27 = arith.constant 5.000000e-01 : f32
      %44 = vector.broadcast %cst_27 : f32 to vector<16x128xf32>
      %45 = arith.mulf %44, %43 : vector<16x128xf32>
      %46 = arith.addf %41, %45 : vector<16x128xf32>
      %cst_28 = arith.constant 5.000000e-01 : f32
      %47 = vector.broadcast %cst_28 : f32 to vector<16x128xf32>
      %48 = arith.subf %46, %47 : vector<16x128xf32>
      %49 = vector.broadcast %37 : vector<1x128xf32> to vector<16x128xf32>
      %50 = arith.mulf %48, %49 : vector<16x128xf32>
      %cst_29 = arith.constant dense<0.000000e+00> : vector<16xf32>
      %51 = vector.multi_reduction <add>, %50, %cst_29 [1] : vector<16x128xf32> to vector<16xf32>
      %52 = vector.shape_cast %51 : vector<16xf32> to vector<16x1xf32>
      %53 = vector.broadcast %52 : vector<16x1xf32> to vector<16x128xf32>
      %54 = vector.broadcast %38 : vector<1x128xf32> to vector<16x128xf32>
      %55 = arith.mulf %53, %54 : vector<16x128xf32>
      %56 = arith.addf %28, %55 : vector<16x128xf32>
      %57 = tpu.concatenate %56, %32, %36 in 1 : vector<16x128xf32>, vector<16x128xf32>, vector<16x128xf32> -> vector<16x384xf32>
      %c0_30 = arith.constant 0 : index
      %c0_31 = arith.constant 0 : index
      %58 = vector.load %arg9[%c0_30, %c0_31] : memref<16x384xf32, #tpu.memory_space<vmem>>, vector<16x384xf32>
      tpu.vector_store %arg9[%c0_30, %c0_31], %57 {strides = array<i32>} : memref<16x384xf32, #tpu.memory_space<vmem>>, vector<16x384xf32>,
    } else {
    }
    return
  }
  func.func @transform_0(%arg0: i32, %arg1: i32) -> (i32, i32) {
    %c0_i32 = arith.constant 0 : i32
    return %arg0, %arg1 : i32, i32
  }
  func.func @transform_1(%arg0: i32, %arg1: i32) -> (i32, i32) {
    %c0_i32 = arith.constant 0 : i32
    %c0_i32_0 = arith.constant 0 : i32
    return %arg0, %c0_i32 : i32, i32
  }
  func.func @transform_2(%arg0: i32, %arg1: i32) -> (i32, i32) {
    %c0_i32 = arith.constant 0 : i32
    %c0_i32_0 = arith.constant 0 : i32
    %c0_i32_1 = arith.constant 0 : i32
    return %c0_i32, %c0_i32_0 : i32, i32
  }
  func.func @transform_3(%arg0: i32, %arg1: i32) -> (i32, i32) {
    %c0_i32 = arith.constant 0 : i32
    %c0_i32_0 = arith.constant 0 : i32
    return %arg1, %c0_i32 : i32, i32
  }
  func.func @transform_4(%arg0: i32, %arg1: i32) -> (i32, i32) {
    %c0_i32 = arith.constant 0 : i32
    %c0_i32_0 = arith.constant 0 : i32
    %c0_i32_1 = arith.constant 0 : i32
    return %c0_i32, %c0_i32_0 : i32, i32
  }
  func.func @transform_5(%arg0: i32, %arg1: i32) -> (i32, i32) {
    %c0_i32 = arith.constant 0 : i32
    %c0_i32_0 = arith.constant 0 : i32
    %c0_i32_1 = arith.constant 0 : i32
    return %c0_i32, %c0_i32_0 : i32, i32
  }
  func.func @transform_6(%arg0: i32, %arg1: i32) -> (i32, i32) {
    %c0_i32 = arith.constant 0 : i32
    %c0_i32_0 = arith.constant 0 : i32
    %c0_i32_1 = arith.constant 0 : i32
    return %c0_i32, %c0_i32_0 : i32, i32
  }
  func.func @transform_7(%arg0: i32, %arg1: i32) -> (i32, i32) {
    %c0_i32 = arith.constant 0 : i32
    %c0_i32_0 = arith.constant 0 : i32
    return %arg0, %c0_i32 : i32, i32
  }
}

module attributes {stable_mosaic.version = 11 : i64} {
  func.func @_encode_kernel(%arg0: i32, %arg1: i32, %arg2: memref<16x128xf32, #tpu.memory_space<vmem>>, %arg3: memref<16x128xf32, #tpu.memory_space<vmem>>, %arg4: memref<2x128xf32, #tpu.memory_space<vmem>>, %arg5: memref<128x128xbf16, #tpu.memory_space<vmem>>, %arg6: memref<1x128xf32, #tpu.memory_space<vmem>>, %arg7: memref<128x256xbf16, #tpu.memory_space<vmem>>, %arg8: memref<1x256xf32, #tpu.memory_space<vmem>>, %arg9: memref<16x384xf32, #tpu.memory_space<vmem>>, %arg10: memref<16x128xf32, #tpu.memory_space<vmem>>) attributes {dimension_semantics = [#tpu.dimension_semantics<parallel>, #tpu.dimension_semantics<arbitrary>], iteration_bounds = array<i64: 1, 2>, scalar_prefetch = 0 : i64, scratch_operands = 1 : i64, tpu.core_type = #tpu.core_type<tc>, window_params = [{transform_indices = @transform_0, window_bounds = array<i64: 16, 128>}, {transform_indices = @transform_1, window_bounds = array<i64: 16, 128>}, {pipeline_mode = #tpu.pipeline_mode<synchronous>, transform_indices = @transform_2, window_bounds = array<i64: 2, 128>}, {transform_indices = @transform_3, window_bounds = array<i64: 128, 128>}, {pipeline_mode = #tpu.pipeline_mode<synchronous>, transform_indices = @transform_4, window_bounds = array<i64: 1, 128>}, {pipeline_mode = #tpu.pipeline_mode<synchronous>, transform_indices = @transform_5, window_bounds = array<i64: 128, 256>}, {pipeline_mode = #tpu.pipeline_mode<synchronous>, transform_indices = @transform_6, window_bounds = array<i64: 1, 256>}, {transform_indices = @transform_7, window_bounds = array<i64: 16, 384>}]} {
    %c0_i32 = arith.constant 0 : i32
    %0 = arith.cmpi eq, %arg1, %c0_i32 : i32
    %1 = arith.extui %0 : i1 to i32
    %c0_i32_0 = arith.constant 0 : i32
    %2 = arith.cmpi ne, %1, %c0_i32_0 : i32
    scf.if %2 {
      %cst_10 = arith.constant 0.000000e+00 : f32
      %16 = vector.broadcast %cst_10 : f32 to vector<16x128xf32>
      %c0_11 = arith.constant 0 : index
      %c0_12 = arith.constant 0 : index
      %17 = vector.load %arg10[%c0_11, %c0_12] : memref<16x128xf32, #tpu.memory_space<vmem>>, vector<16x128xf32>
      tpu.vector_store %arg10[%c0_11, %c0_12], %16 {strides = array<i32>} : memref<16x128xf32, #tpu.memory_space<vmem>>, vector<16x128xf32>,
    } else {
    }
    %c0 = arith.constant 0 : index
    %c0_1 = arith.constant 0 : index
    %3 = vector.load %arg2[%c0, %c0_1] : memref<16x128xf32, #tpu.memory_space<vmem>>, vector<16x128xf32>
    %cst = arith.constant 1.000000e+00 : f32
    %4 = vector.broadcast %cst : f32 to vector<16x128xf32>
    %5 = arith.addf %3, %4 : vector<16x128xf32>
    %6 = math.log %5 : vector<16x128xf32>
    %c0_2 = arith.constant 0 : index
    %c0_3 = arith.constant 0 : index
    %7 = vector.load %arg10[%c0_2, %c0_3] : memref<16x128xf32, #tpu.memory_space<vmem>>, vector<16x128xf32>
    %8 = arith.truncf %6 : vector<16x128xf32> to vector<16x128xbf16>
    %c0_4 = arith.constant 0 : index
    %c0_5 = arith.constant 0 : index
    %9 = vector.load %arg5[%c0_4, %c0_5] : memref<128x128xbf16, #tpu.memory_space<vmem>>, vector<128x128xbf16>
    %cst_6 = arith.constant dense<0.000000e+00> : vector<16x128xf32>
    %10 = tpu.matmul %8, %9, %cst_6 {dimension_numbers = #tpu.dot_dimension_numbers<[1], [0], [0], [1], [0, 0, 1, 1], [], []>} : vector<16x128xbf16>, vector<128x128xbf16>, vector<16x128xf32> -> vector<16x128xf32>
    %11 = arith.addf %7, %10 : vector<16x128xf32>
    %c0_7 = arith.constant 0 : index
    %c0_8 = arith.constant 0 : index
    %12 = vector.load %arg10[%c0_7, %c0_8] : memref<16x128xf32, #tpu.memory_space<vmem>>, vector<16x128xf32>
    tpu.vector_store %arg10[%c0_7, %c0_8], %11 {strides = array<i32>} : memref<16x128xf32, #tpu.memory_space<vmem>>, vector<16x128xf32>,
    %c1_i32 = arith.constant 1 : i32
    %13 = arith.cmpi eq, %arg1, %c1_i32 : i32
    %14 = arith.extui %13 : i1 to i32
    %c0_i32_9 = arith.constant 0 : i32
    %15 = arith.cmpi ne, %14, %c0_i32_9 : i32
    scf.if %15 {
      %c0_10 = arith.constant 0 : index
      %c0_11 = arith.constant 0 : index
      %16 = vector.load %arg10[%c0_10, %c0_11] : memref<16x128xf32, #tpu.memory_space<vmem>>, vector<16x128xf32>
      %c0_12 = arith.constant 0 : index
      %c0_13 = arith.constant 0 : index
      %17 = vector.load %arg6[%c0_12, %c0_13] : memref<1x128xf32, #tpu.memory_space<vmem>>, vector<1x128xf32>
      %18 = vector.broadcast %17 : vector<1x128xf32> to vector<16x128xf32>
      %19 = arith.addf %16, %18 : vector<16x128xf32>
      %cst_14 = arith.constant 0.000000e+00 : f32
      %20 = vector.broadcast %cst_14 : f32 to vector<16x128xf32>
      %21 = arith.maximumf %19, %20 : vector<16x128xf32>
      %22 = arith.truncf %21 : vector<16x128xf32> to vector<16x128xbf16>
      %c0_15 = arith.constant 0 : index
      %c0_16 = arith.constant 0 : index
      %23 = vector.load %arg7[%c0_15, %c0_16] : memref<128x256xbf16, #tpu.memory_space<vmem>>, vector<128x256xbf16>
      %cst_17 = arith.constant dense<0.000000e+00> : vector<16x256xf32>
      %24 = tpu.matmul %22, %23, %cst_17 {dimension_numbers = #tpu.dot_dimension_numbers<[1], [0], [0], [1], [0, 0, 1, 1], [], []>} : vector<16x128xbf16>, vector<128x256xbf16>, vector<16x256xf32> -> vector<16x256xf32>
      %c0_18 = arith.constant 0 : index
      %c0_19 = arith.constant 0 : index
      %25 = vector.load %arg8[%c0_18, %c0_19] : memref<1x256xf32, #tpu.memory_space<vmem>>, vector<1x256xf32>
      %26 = vector.broadcast %25 : vector<1x256xf32> to vector<16x256xf32>
      %27 = arith.addf %24, %26 : vector<16x256xf32>
      %28 = vector.extract_strided_slice %27 {offsets = [0, 0], sizes = [16, 128], strides = [1, 1]} : vector<16x256xf32> to vector<16x128xf32>
      %29 = vector.extract_strided_slice %27 {offsets = [0, 128], sizes = [16, 128], strides = [1, 1]} : vector<16x256xf32> to vector<16x128xf32>
      %30 = math.exp %29 : vector<16x128xf32>
      %cst_20 = arith.constant 9.99999974E-5 : f32
      %31 = vector.broadcast %cst_20 : f32 to vector<16x128xf32>
      %32 = arith.addf %30, %31 : vector<16x128xf32>
      %33 = math.sqrt %32 : vector<16x128xf32>
      %c0_21 = arith.constant 0 : index
      %c0_22 = arith.constant 0 : index
      %34 = vector.load %arg3[%c0_21, %c0_22] : memref<16x128xf32, #tpu.memory_space<vmem>>, vector<16x128xf32>
      %35 = arith.mulf %33, %34 : vector<16x128xf32>
      %36 = arith.addf %28, %35 : vector<16x128xf32>
      %c0_23 = arith.constant 0 : index
      %c0_24 = arith.constant 0 : index
      %37 = vector.load %arg4[%c0_23, %c0_24] : memref<2x128xf32, #tpu.memory_space<vmem>>, vector<1x128xf32>
      %c1 = arith.constant 1 : index
      %c0_25 = arith.constant 0 : index
      %38 = vector.load %arg4[%c1, %c0_25] : memref<2x128xf32, #tpu.memory_space<vmem>>, vector<1x128xf32>
      %39 = math.log %32 : vector<16x128xf32>
      %cst_26 = arith.constant -5.000000e-01 : f32
      %40 = vector.broadcast %cst_26 : f32 to vector<16x128xf32>
      %41 = arith.mulf %40, %39 : vector<16x128xf32>
      %42 = arith.mulf %28, %28 : vector<16x128xf32>
      %43 = arith.addf %32, %42 : vector<16x128xf32>
      %cst_27 = arith.constant 5.000000e-01 : f32
      %44 = vector.broadcast %cst_27 : f32 to vector<16x128xf32>
      %45 = arith.mulf %44, %43 : vector<16x128xf32>
      %46 = arith.addf %41, %45 : vector<16x128xf32>
      %cst_28 = arith.constant 5.000000e-01 : f32
      %47 = vector.broadcast %cst_28 : f32 to vector<16x128xf32>
      %48 = arith.subf %46, %47 : vector<16x128xf32>
      %49 = vector.broadcast %37 : vector<1x128xf32> to vector<16x128xf32>
      %50 = arith.mulf %48, %49 : vector<16x128xf32>
      %cst_29 = arith.constant dense<0.000000e+00> : vector<16xf32>
      %51 = vector.multi_reduction <add>, %50, %cst_29 [1] : vector<16x128xf32> to vector<16xf32>
      %52 = vector.shape_cast %51 : vector<16xf32> to vector<16x1xf32>
      %53 = vector.broadcast %52 : vector<16x1xf32> to vector<16x128xf32>
      %54 = vector.broadcast %38 : vector<1x128xf32> to vector<16x128xf32>
      %55 = arith.mulf %53, %54 : vector<16x128xf32>
      %56 = arith.addf %28, %55 : vector<16x128xf32>
      %57 = tpu.concatenate %56, %32, %36 in 1 : vector<16x128xf32>, vector<16x128xf32>, vector<16x128xf32> -> vector<16x384xf32>
      %c0_30 = arith.constant 0 : index
      %c0_31 = arith.constant 0 : index
      %58 = vector.load %arg9[%c0_30, %c0_31] : memref<16x384xf32, #tpu.memory_space<vmem>>, vector<16x384xf32>
      tpu.vector_store %arg9[%c0_30, %c0_31], %57 {strides = array<i32>} : memref<16x384xf32, #tpu.memory_space<vmem>>, vector<16x384xf32>,
    } else {
    }
    return
  }
  func.func @transform_0(%arg0: i32, %arg1: i32) -> (i32, i32) {
    %c0_i32 = arith.constant 0 : i32
    return %arg0, %arg1 : i32, i32
  }
  func.func @transform_1(%arg0: i32, %arg1: i32) -> (i32, i32) {
    %c0_i32 = arith.constant 0 : i32
    %c0_i32_0 = arith.constant 0 : i32
    return %arg0, %c0_i32 : i32, i32
  }
  func.func @transform_2(%arg0: i32, %arg1: i32) -> (i32, i32) {
    %c0_i32 = arith.constant 0 : i32
    %c0_i32_0 = arith.constant 0 : i32
    %c0_i32_1 = arith.constant 0 : i32
    return %c0_i32, %c0_i32_0 : i32, i32
  }
  func.func @transform_3(%arg0: i32, %arg1: i32) -> (i32, i32) {
    %c0_i32 = arith.constant 0 : i32
    %c0_i32_0 = arith.constant 0 : i32
    return %arg1, %c0_i32 : i32, i32
  }
  func.func @transform_4(%arg0: i32, %arg1: i32) -> (i32, i32) {
    %c0_i32 = arith.constant 0 : i32
    %c0_i32_0 = arith.constant 0 : i32
    %c0_i32_1 = arith.constant 0 : i32
    return %c0_i32, %c0_i32_0 : i32, i32
  }
  func.func @transform_5(%arg0: i32, %arg1: i32) -> (i32, i32) {
    %c0_i32 = arith.constant 0 : i32
    %c0_i32_0 = arith.constant 0 : i32
    %c0_i32_1 = arith.constant 0 : i32
    return %c0_i32, %c0_i32_0 : i32, i32
  }
  func.func @transform_6(%arg0: i32, %arg1: i32) -> (i32, i32) {
    %c0_i32 = arith.constant 0 : i32
    %c0_i32_0 = arith.constant 0 : i32
    %c0_i32_1 = arith.constant 0 : i32
    return %c0_i32, %c0_i32_0 : i32, i32
  }
  func.func @transform_7(%arg0: i32, %arg1: i32) -> (i32, i32) {
    %c0_i32 = arith.constant 0 : i32
    %c0_i32_0 = arith.constant 0 : i32
    return %arg0, %c0_i32 : i32, i32
  }
}

</mosaic_0001>

<llo_original>
// kernel: tpu_custom_call.1
$region0: #{tpu_custom_call.1}
  #allocation0 [shape = 'u32[]', space=smem, size = 0x4, offset = 0x4, fixed_abs, tag = 'smem constant byte address 0x4 - core index']
  #allocation1 [shape = 'u32[144,128]{1,0:T(1,128)}', space=vmem, size = 0x12000, scoped, tag = 'internal scratch']
  #allocation2 [shape = 'f32[16,128]{1,0:T(8,128)}', space=vmem, size = 0x2000, scoped, tag = 'scratch operand']
  %s0 = inlined_call_operand.hbm [shape: f32[16,256], index: 0, kind: input, shape index: {}]
  %s1 = inlined_call_operand.hbm [shape: f32[16,128], index: 1, kind: input, shape index: {}]
  %s2 = inlined_call_operand.vmem [shape: f32[2,128], index: 2, kind: input, shape index: {}]
  %s3 = inlined_call_operand.hbm [shape: bf16[256,128], index: 3, kind: input, shape index: {}]
  %s4 = inlined_call_operand.vmem [shape: f32[1,128], index: 4, kind: input, shape index: {}]
  %s5 = inlined_call_operand.hbm [shape: bf16[128,256], index: 5, kind: input, shape index: {}]
  %s6 = inlined_call_operand.vmem [shape: f32[1,256], index: 6, kind: input, shape index: {}]
  %s7 = inlined_call_operand.hbm [shape: f32[16,384], index: 7, kind: output, shape index: {}]
  %s8 = sld [smem:[#allocation0]]
  $region85: #{tpu_custom_call.1} parent=0
    _
  %s10 = ssub.s32 1, %s8
  %s11 = scalar_select 0, %s10, %s8
  $region1: #{tpu_custom_call.1} parent=0
    #allocation3 [shape = 'u8[16384]{0}', space=vmem, size = 0x4000, scoped, tag = 'input window, operand 0']
    #allocation4 [shape = 's32[2]{0}', space=sflag, size = 0x8, scoped, tag = 'scoped memory for tpu_custom_call.1']
    #allocation5 [shape = 's32[2]{0}', space=sflag, size = 0x8, scoped, tag = 'scoped memory for tpu_custom_call.1']
    #allocation6 [shape = 'u8[8192]{0}', space=vmem, size = 0x2000, scoped, tag = 'input window, operand 1, single buffered']
    #allocation7 [shape = 's32[1]{0}', space=sflag, size = 0x4, scoped, tag = 'scoped memory for tpu_custom_call.1']
    #allocation8 [shape = 'u8[65536]{0}', space=vmem, size = 0x10000, scoped, tag = 'input window, operand 3']
    #allocation9 [shape = 'u8[65536]{0}', space=vmem, size = 0x10000, scoped, tag = 'input window, operand 5, single buffered']
    #allocation10 [shape = 'u8[24576]{0}', space=vmem, size = 0x6000, scoped, tag = 'output window, operand 0, single buffered']
    %12 = vsyncpa [#allocation4], 0
    %s13 = scalar_lea.sflag [#allocation4], 1
    %14 = vsyncpa %s13, 0
    %15 = vsyncpa [#allocation7], 0
    %16 = vsyncpa [#allocation5], 0
    loop: start=0, step=1, limit=4
    $region2: #{tpu_custom_call.1} parent=1 // loop_pre_header
      _
    $region3: #{tpu_custom_call.1} parent=1 // loop_header
      %s18 = sphi 0, %s22
      %p19 = scmp.ge.s32.totalorder %s18, 4
      %s25 = sphi 0, %s37
      %s26 = sphi 0, %s33
      %s27 = sphi 0, %s25
      %s28 = sphi 0, %s26
      %s29 = sphi 0, %s27
      %s30 = sphi 0, %s28
      %s42 = sphi 0, %s44
      %s45 = sphi 0, %s42
      %s46 = sphi 0, %s45
      %s62 = sphi 0, %s46
      %s68 = sphi 0, %s70
      %s71 = sphi 0, %s68
      %s72 = sphi 0, %s71
      %s88 = sphi 0, %s72
      %s92 = sphi 0, %s92
      %s94 = sphi 0, %s92
      %s95 = sphi 0, %s94
      %s109 = sphi 0, %s95
      %s115 = sphi 0, %s117
      %s118 = sphi 0, %s115
      %s119 = sphi 0, %s118
      %s135 = sphi 0, %s119
      %s139 = sphi 0, %s139
      %s141 = sphi 0, %s139
      %s142 = sphi 0, %s141
      %s156 = sphi 0, %s142
      %s160 = sphi 0, %s160
      %s162 = sphi 0, %s160
      %s163 = sphi 0, %s162
      %s177 = sphi 0, %s163
      %s181 = sphi 0, %s181
      %s183 = sphi 0, %s181
      %s184 = sphi 0, %s183
      %s198 = sphi 0, %s184
      %s204 = sphi 0, %s206
      %s207 = sphi 0, %s204
      %s208 = sphi 0, %s207
      %s224 = sphi 0, %s208
    $region4: #{tpu_custom_call.1} parent=1 // loop_header_branch
      %21 = sbr.rel (%p19) target = $region8
    $region5: #{tpu_custom_call.1} parent=1 // loop_body
      %s23 = ssub.s32 %s18, 1
      %s24 = ssub.s32 %s18, 2
      %s31 = sadd.s32 1, %s26
      %p32 = scmp.ge.s32.totalorder %s31, 2
      %s33 = scalar_select %p32, 0, %s31
      %s34 = sadd.s32 1, %s25
      %s35 = scalar_select %p32, %s34, %s25
      %p36 = scmp.ge.s32.totalorder %s35, 1
      %s37 = scalar_select %p36, 0, %s35
      %s38 = ssub.s32 %s25, %s37
      %s39 = ssub.s32 %s26, %s33
      %s40 = sor.u32 %s38, %s39
      %p41 = scmp.eq.s32.totalorder %s40, 0
      %s43 = sadd.s32 %s42, 1
      %s44 = scalar_select %p41, %s42, %s43
      %p47 = pneg %p41
      %p48 = scmp.eq.s32.totalorder %s18, 1
      %p49 = por %p47, %p48
      %p50 = scmp.ne.s32.totalorder %s42, %s45
      %p51 = scmp.eq.s32.totalorder %s18, 0
      %p52 = por %p50, %p51
      %p53 = scmp.ne.s32.totalorder %s42, %s45
      %p54 = scmp.eq.s32.totalorder %s23, 1
      %p55 = por %p53, %p54
      %p56 = scmp.ne.s32.totalorder %s45, %s46
      %p57 = scmp.eq.s32.totalorder %s23, 0
      %p58 = por %p56, %p57
      %p59 = scmp.ne.s32.totalorder %s45, %s46
      %p60 = scmp.eq.s32.totalorder %s24, 1
      %p61 = por %p59, %p60
      %p63 = scmp.ne.s32.totalorder %s46, %s62
      %p64 = scmp.eq.s32.totalorder %s24, 0
      %p65 = por %p63, %p64
      %s66 = ssub.s32 %s25, %s37
      %p67 = scmp.eq.s32.totalorder %s66, 0
      %s69 = sadd.s32 %s68, 1
      %s70 = scalar_select %p67, %s68, %s69
      %p73 = pneg %p67
      %p74 = scmp.eq.s32.totalorder %s18, 1
      %p75 = por %p73, %p74
      %p76 = scmp.ne.s32.totalorder %s68, %s71
      %p77 = scmp.eq.s32.totalorder %s18, 0
      %p78 = por %p76, %p77
      %p79 = scmp.ne.s32.totalorder %s68, %s71
      %p80 = scmp.eq.s32.totalorder %s23, 1
      %p81 = por %p79, %p80
      %p82 = scmp.ne.s32.totalorder %s71, %s72
      %p83 = scmp.eq.s32.totalorder %s23, 0
      %p84 = por %p82, %p83
      %p85 = scmp.ne.s32.totalorder %s71, %s72
      %p86 = scmp.eq.s32.totalorder %s24, 1
      %p87 = por %p85, %p86
      %p89 = scmp.ne.s32.totalorder %s72, %s88
      %p90 = scmp.eq.s32.totalorder %s24, 0
      %p91 = por %p89, %p90
      %s93 = sadd.s32 %s92, 1
      %p96 = scmp.eq.s32.totalorder %s18, 1
      %p97 = scmp.ne.s32.totalorder %s92, %s94
      %p98 = scmp.eq.s32.totalorder %s18, 0
      %p99 = por %p97, %p98
      %p100 = scmp.ne.s32.totalorder %s92, %s94
      %p101 = scmp.eq.s32.totalorder %s23, 1
      %p102 = por %p100, %p101
      %p103 = scmp.ne.s32.totalorder %s94, %s95
      %p104 = scmp.eq.s32.totalorder %s23, 0
      %p105 = por %p103, %p104
      %p106 = scmp.ne.s32.totalorder %s94, %s95
      %p107 = scmp.eq.s32.totalorder %s24, 1
      %p108 = por %p106, %p107
      %p110 = scmp.ne.s32.totalorder %s95, %s109
      %p111 = scmp.eq.s32.totalorder %s24, 0
      %p112 = por %p110, %p111
      %s113 = ssub.s32 %s26, %s33
      %p114 = scmp.eq.s32.totalorder %s113, 0
      %s116 = sadd.s32 %s115, 1
      %s117 = scalar_select %p114, %s115, %s116
      %p120 = pneg %p114
      %p121 = scmp.eq.s32.totalorder %s18, 1
      %p122 = por %p120, %p121
      %p123 = scmp.ne.s32.totalorder %s115, %s118
      %p124 = scmp.eq.s32.totalorder %s18, 0
      %p125 = por %p123, %p124
      %p126 = scmp.ne.s32.totalorder %s115, %s118
      %p127 = scmp.eq.s32.totalorder %s23, 1
      %p128 = por %p126, %p127
      %p129 = scmp.ne.s32.totalorder %s118, %s119
      %p130 = scmp.eq.s32.totalorder %s23, 0
      %p131 = por %p129, %p130
      %p132 = scmp.ne.s32.totalorder %s118, %s119
      %p133 = scmp.eq.s32.totalorder %s24, 1
      %p134 = por %p132, %p133
      %p136 = scmp.ne.s32.totalorder %s119, %s135
      %p137 = scmp.eq.s32.totalorder %s24, 0
      %p138 = por %p136, %p137
      %s140 = sadd.s32 %s139, 1
      %p143 = scmp.eq.s32.totalorder %s18, 1
      %p144 = scmp.ne.s32.totalorder %s139, %s141
      %p145 = scmp.eq.s32.totalorder %s18, 0
      %p146 = por %p144, %p145
      %p147 = scmp.ne.s32.totalorder %s139, %s141
      %p148 = scmp.eq.s32.totalorder %s23, 1
      %p149 = por %p147, %p148
      %p150 = scmp.ne.s32.totalorder %s141, %s142
      %p151 = scmp.eq.s32.totalorder %s23, 0
      %p152 = por %p150, %p151
      %p153 = scmp.ne.s32.totalorder %s141, %s142
      %p154 = scmp.eq.s32.totalorder %s24, 1
      %p155 = por %p153, %p154
      %p157 = scmp.ne.s32.totalorder %s142, %s156
      %p158 = scmp.eq.s32.totalorder %s24, 0
      %p159 = por %p157, %p158
      %s161 = sadd.s32 %s160, 1
      %p164 = scmp.eq.s32.totalorder %s18, 1
      %p165 = scmp.ne.s32.totalorder %s160, %s162
      %p166 = scmp.eq.s32.totalorder %s18, 0
      %p167 = por %p165, %p166
      %p168 = scmp.ne.s32.totalorder %s160, %s162
      %p169 = scmp.eq.s32.totalorder %s23, 1
      %p170 = por %p168, %p169
      %p171 = scmp.ne.s32.totalorder %s162, %s163
      %p172 = scmp.eq.s32.totalorder %s23, 0
      %p173 = por %p171, %p172
      %p174 = scmp.ne.s32.totalorder %s162, %s163
      %p175 = scmp.eq.s32.totalorder %s24, 1
      %p176 = por %p174, %p175
      %p178 = scmp.ne.s32.totalorder %s163, %s177
      %p179 = scmp.eq.s32.totalorder %s24, 0
      %p180 = por %p178, %p179
      %s182 = sadd.s32 %s181, 1
      %p185 = scmp.eq.s32.totalorder %s18, 1
      %p186 = scmp.ne.s32.totalorder %s181, %s183
      %p187 = scmp.eq.s32.totalorder %s18, 0
      %p188 = por %p186, %p187
      %p189 = scmp.ne.s32.totalorder %s181, %s183
      %p190 = scmp.eq.s32.totalorder %s23, 1
      %p191 = por %p189, %p190
      %p192 = scmp.ne.s32.totalorder %s183, %s184
      %p193 = scmp.eq.s32.totalorder %s23, 0
      %p194 = por %p192, %p193
      %p195 = scmp.ne.s32.totalorder %s183, %s184
      %p196 = scmp.eq.s32.totalorder %s24, 1
      %p197 = por %p195, %p196
      %p199 = scmp.ne.s32.totalorder %s184, %s198
      %p200 = scmp.eq.s32.totalorder %s24, 0
      %p201 = por %p199, %p200
      %s202 = ssub.s32 %s25, %s37
      %p203 = scmp.eq.s32.totalorder %s202, 0
      %s205 = sadd.s32 %s204, 1
      %s206 = scalar_select %p203, %s204, %s205
      %p209 = pneg %p203
      %p210 = scmp.eq.s32.totalorder %s18, 1
      %p211 = por %p209, %p210
      %p212 = scmp.ne.s32.totalorder %s204, %s207
      %p213 = scmp.eq.s32.totalorder %s18, 0
      %p214 = por %p212, %p213
      %p215 = scmp.ne.s32.totalorder %s204, %s207
      %p216 = scmp.eq.s32.totalorder %s23, 1
      %p217 = por %p215, %p216
      %p218 = scmp.ne.s32.totalorder %s207, %s208
      %p219 = scmp.eq.s32.totalorder %s23, 0
      %p220 = por %p218, %p219
      %p221 = scmp.ne.s32.totalorder %s207, %s208
      %p222 = scmp.eq.s32.totalorder %s24, 1
      %p223 = por %p221, %p222
      %p225 = scmp.ne.s32.totalorder %s208, %s224
      %p226 = scmp.eq.s32.totalorder %s24, 0
      %p227 = por %p225, %p226
      %p228 = scmp.le.s32.totalorder 1, %s18
      %p229 = scmp.lt.s32.totalorder %s18, 3
      %p230 = pnand %p228, %p229
      %p231 = pneg %p230
      // Predicated region
      $region9: #{tpu_custom_call.1} parent=5 // pred_check
        _
      $region10: #{tpu_custom_call.1} parent=5 // pred_check_branch
        %233 = sbr.rel (%p230) target = $region12
      $region11: #{tpu_custom_call.1} parent=5 // pred_region
        %s234 = ssub.s32 %s18, 1
        // Predicated region
        $region13: #{tpu_custom_call.1} parent=11 // pred_check
          %p235 = pneg %p84
        $region14: #{tpu_custom_call.1} parent=11 // pred_check_branch
          %237 = sbr.rel (%p235) target = $region16
        $region15: #{tpu_custom_call.1} parent=11 // pred_region
          %s238 = smul.u32 2, %s27
          %s240 = ssub.s32 256, 256
          %241 = vsyncadd [#allocation7], %s240
          %s242 = smul.addr %s238, 128
          %s243 = scalar_lea.hbm %s1, %s242
          %s244 = sshll.u32 [#allocation6], 4
          %s245 = int_to_ptr.vmem [resolvable:$true] %s244
          %250 = dma.hbm_to_vmem [thread:$0]  %s243, 256, %s245, [#allocation7], 128, 128, 8
        $region16: #{tpu_custom_call.1} parent=11 // pred_fallthru
          _
        // Predicated region
        $region17: #{tpu_custom_call.1} parent=11 // pred_check
          %p251 = pneg %p105
        $region18: #{tpu_custom_call.1} parent=11 // pred_check_branch
          %253 = sbr.rel (%p251) target = $region20
        $region19: #{tpu_custom_call.1} parent=11 // pred_region
          _
        $region20: #{tpu_custom_call.1} parent=11 // pred_fallthru
          _
        // Predicated region
        $region21: #{tpu_custom_call.1} parent=11 // pred_check
          %p254 = pneg %p152
        $region22: #{tpu_custom_call.1} parent=11 // pred_check_branch
          %256 = sbr.rel (%p254) target = $region24
        $region23: #{tpu_custom_call.1} parent=11 // pred_region
          _
        $region24: #{tpu_custom_call.1} parent=11 // pred_fallthru
          _
        // Predicated region
        $region25: #{tpu_custom_call.1} parent=11 // pred_check
          %p257 = pneg %p173
        $region26: #{tpu_custom_call.1} parent=11 // pred_check_branch
          %259 = sbr.rel (%p257) target = $region28
        $region27: #{tpu_custom_call.1} parent=11 // pred_region
          %s261 = ssub.s32 2048, 2048
          %262 = vsyncadd [#allocation7], %s261
          %s263 = sshll.u32 [#allocation9], 4
          %s264 = int_to_ptr.vmem [resolvable:$true] %s263
          %269 = dma.hbm_to_vmem [thread:$0]  %s5, 2048, %s264, [#allocation7], 128, 128, 8
        $region28: #{tpu_custom_call.1} parent=11 // pred_fallthru
          _
        // Predicated region
        $region29: #{tpu_custom_call.1} parent=11 // pred_check
          %p270 = pneg %p194
        $region30: #{tpu_custom_call.1} parent=11 // pred_check_branch
          %272 = sbr.rel (%p270) target = $region32
        $region31: #{tpu_custom_call.1} parent=11 // pred_region
          _
        $region32: #{tpu_custom_call.1} parent=11 // pred_fallthru
          _
      $region12: #{tpu_custom_call.1} parent=5 // pred_fallthru
        _
      %p273 = scmp.lt.s32.totalorder %s18, 2
      // Predicated region
      $region33: #{tpu_custom_call.1} parent=5 // pred_check
        %p274 = pneg %p273
      $region34: #{tpu_custom_call.1} parent=5 // pred_check_branch
        %276 = sbr.rel (%p274) target = $region36
      $region35: #{tpu_custom_call.1} parent=5 // pred_region
        // Predicated region
        $region37: #{tpu_custom_call.1} parent=35 // pred_check
          %p277 = pneg %p52
        $region38: #{tpu_custom_call.1} parent=35 // pred_check_branch
          %279 = sbr.rel (%p277) target = $region40
        $region39: #{tpu_custom_call.1} parent=35 // pred_region
          %s280 = sand.u32 %s18, 1
          %s281 = scalar_lea.sflag [#allocation4], %s280
          %s282 = sand.u32 %s42, 1
          %s283 = smul.addr %s282, 16
          %s284 = scalar_lea.vmem [#allocation3], %s283
          %s285 = smul.u32 2, %s25
          %s287 = ssub.s32 256, 256
          %288 = vsyncadd %s281, %s287
          %s289 = smul.addr %s285, 2
          %s290 = sadd.s32 %s26, %s289
          %s291 = smul.addr %s290, 128
          %s292 = scalar_lea.hbm %s0, %s291
          %s293 = sshll.u32 %s284, 4
          %s294 = int_to_ptr.vmem [resolvable:$true] %s293
          %299 = dma.hbm_to_vmem [thread:$0]  %s292, 256, %s294, %s281, 256, 128, 8
        $region40: #{tpu_custom_call.1} parent=35 // pred_fallthru
          _
        // Predicated region
        $region41: #{tpu_custom_call.1} parent=35 // pred_check
          %p300 = pneg %p125
        $region42: #{tpu_custom_call.1} parent=35 // pred_check_branch
          %302 = sbr.rel (%p300) target = $region44
        $region43: #{tpu_custom_call.1} parent=35 // pred_region
          %s303 = sand.u32 %s18, 1
          %s304 = scalar_lea.sflag [#allocation4], %s303
          %s305 = sand.u32 %s115, 1
          %s306 = smul.addr %s305, 64
          %s307 = scalar_lea.vmem [#allocation8], %s306
          %s308 = smul.u32 16, %s26
          %s310 = ssub.s32 1024, 1024
          %311 = vsyncadd %s304, %s310
          %s312 = smul.addr %s308, 64
          %s313 = scalar_lea.hbm %s3, %s312
          %s314 = sshll.u32 %s307, 4
          %s315 = int_to_ptr.vmem [resolvable:$true] %s314
          %320 = dma.hbm_to_vmem [thread:$0]  %s313, 1024, %s315, %s304, 64, 64, 4
        $region44: #{tpu_custom_call.1} parent=35 // pred_fallthru
          _
      $region36: #{tpu_custom_call.1} parent=5 // pred_fallthru
        _
      %p321 = scmp.le.s32.totalorder 1, %s18
      %p322 = scmp.lt.s32.totalorder %s18, 3
      %p323 = pnand %p321, %p322
      %p324 = pneg %p323
      // Predicated region
      $region45: #{tpu_custom_call.1} parent=5 // pred_check
        _
      $region46: #{tpu_custom_call.1} parent=5 // pred_check_branch
        %326 = sbr.rel (%p323) target = $region48
      $region47: #{tpu_custom_call.1} parent=5 // pred_region
        %s327 = ssub.s32 %s18, 1
        %s328 = sand.u32 %s23, 1
        %s329 = scalar_lea.sflag [#allocation4], %s328
        %s330 = sand.u32 %s45, 1
        %s331 = smul.addr %s330, 16
        %s332 = scalar_lea.vmem [#allocation3], %s331
        // Predicated region
        $region49: #{tpu_custom_call.1} parent=47 // pred_check
          %p333 = pneg %p58
        $region50: #{tpu_custom_call.1} parent=47 // pred_check_branch
          %335 = sbr.rel (%p333) target = $region52
        $region51: #{tpu_custom_call.1} parent=47 // pred_region
          %336 = dma.done %s329, 256
        $region52: #{tpu_custom_call.1} parent=47 // pred_fallthru
          _
        // Predicated region
        $region53: #{tpu_custom_call.1} parent=47 // pred_check
          %p337 = pneg %p84
        $region54: #{tpu_custom_call.1} parent=47 // pred_check_branch
          %339 = sbr.rel (%p337) target = $region56
        $region55: #{tpu_custom_call.1} parent=47 // pred_region
          %340 = dma.done [#allocation7], 256
        $region56: #{tpu_custom_call.1} parent=47 // pred_fallthru
          _
        %s341 = sand.u32 %s23, 1
        %s342 = scalar_lea.sflag [#allocation4], %s341
        %s343 = sand.u32 %s118, 1
        %s344 = smul.addr %s343, 64
        %s345 = scalar_lea.vmem [#allocation8], %s344
        // Predicated region
        $region57: #{tpu_custom_call.1} parent=47 // pred_check
          %p346 = pneg %p131
        $region58: #{tpu_custom_call.1} parent=47 // pred_check_branch
          %348 = sbr.rel (%p346) target = $region60
        $region59: #{tpu_custom_call.1} parent=47 // pred_region
          %349 = dma.done %s342, 1024
        $region60: #{tpu_custom_call.1} parent=47 // pred_fallthru
          _
        // Predicated region
        $region61: #{tpu_custom_call.1} parent=47 // pred_check
          %p350 = pneg %p173
        $region62: #{tpu_custom_call.1} parent=47 // pred_check_branch
          %352 = sbr.rel (%p350) target = $region64
        $region63: #{tpu_custom_call.1} parent=47 // pred_region
          %353 = dma.done [#allocation7], 2048
        $region64: #{tpu_custom_call.1} parent=47 // pred_fallthru
          _
        %s354 = sand.u32 %s23, 1
        %s355 = scalar_lea.sflag [#allocation4], %s354
        %s356 = sand.u32 %s45, 1
        %s357 = smul.addr %s356, 16
        %s358 = scalar_lea.vmem [#allocation3], %s357
        %p359 = pneg %p58
        %p360 = pneg %p55
        %p361 = pneg %p84
        %p362 = pneg %p81
        %p363 = pneg %p105
        %p364 = pneg %p102
        %s365 = sand.u32 %s23, 1
        %s366 = scalar_lea.sflag [#allocation4], %s365
        %s367 = sand.u32 %s118, 1
        %s368 = smul.addr %s367, 64
        %s369 = scalar_lea.vmem [#allocation8], %s368
        %p370 = pneg %p131
        %p371 = pneg %p128
        %p372 = pneg %p152
        %p373 = pneg %p149
        %p374 = pneg %p173
        %p375 = pneg %p170
        %p376 = pneg %p194
        %p377 = pneg %p191
        %p378 = pneg %p220
        %p379 = pneg %p217
        %s380 = smul.u32 2, %s27
        %s381 = smul.u32 2, %s27
        %s382 = smul.u32 16, %s28
        %s383 = smul.u32 2, %s27
        %p385 = scmp.eq.s32.totalorder %s28, 0
        // Predicated region
        $region65: #{tpu_custom_call.1} parent=47 // pred_check
          %p386 = pneg %p385
        $region66: #{tpu_custom_call.1} parent=47 // pred_check_branch
          %388 = sbr.rel (%p386) target = $region68
        $region67: #{tpu_custom_call.1} parent=47 // pred_region
          %389 = vst [vmem:[#allocation2] sm:$0xff] 0.0
          %390 = vst [vmem:[#allocation2 + $0x8] sm:$0xff] 0.0
        $region68: #{tpu_custom_call.1} parent=47 // pred_fallthru
          _
        %v391 = vld [vmem:[%s332] sm:$0xff]
        %v392 = vld [vmem:[%s332 + $0x8] sm:$0xff]
        %v393 = vadd.f32 %v391, 1.0
        %v394 = vadd.f32 %v392, 1.0
        %v395 = vlog2.pop %v393
        %v396 = vmul.f32 %v395, 0.6931472
        %v397 = vlog2.pop %v394
        %v398 = vmul.f32 %v397, 0.6931472
        %v399 = vld [vmem:[#allocation2] sm:$0xff]
        %v400 = vld [vmem:[#allocation2 + $0x8] sm:$0xff]
        %v401 = vpack.c.bf16 %v398, %v396
        %v402 = vld [vmem:[%s345] sm:$0xf]
        %v403 = vld [vmem:[%s345 + $0x4] sm:$0xf]
        %v404 = vld [vmem:[%s345 + $0x8] sm:$0xf]
        %v405 = vld [vmem:[%s345 + $0xc] sm:$0xf]
        %v406 = vld [vmem:[%s345 + $0x10] sm:$0xf]
        %v407 = vld [vmem:[%s345 + $0x14] sm:$0xf]
        %v408 = vld [vmem:[%s345 + $0x18] sm:$0xf]
        %v409 = vld [vmem:[%s345 + $0x1c] sm:$0xf]
        %v410 = vld [vmem:[%s345 + $0x20] sm:$0xf]
        %v411 = vld [vmem:[%s345 + $0x24] sm:$0xf]
        %v412 = vld [vmem:[%s345 + $0x28] sm:$0xf]
        %v413 = vld [vmem:[%s345 + $0x2c] sm:$0xf]
        %v414 = vld [vmem:[%s345 + $0x30] sm:$0xf]
        %v415 = vld [vmem:[%s345 + $0x34] sm:$0xf]
        %v416 = vld [vmem:[%s345 + $0x38] sm:$0xf]
        %v417 = vld [vmem:[%s345 + $0x3c] sm:$0xf]
        %v434 = vunpack.c.l.b16 %v402
        %v435 = vunpack.c.l.b16 %v403
        %v436 = vunpack.c.l.b16 %v404
        %v437 = vunpack.c.l.b16 %v405
        %v438 = vunpack.c.l.b16 %v406
        %v439 = vunpack.c.l.b16 %v407
        %v440 = vunpack.c.l.b16 %v408
        %v441 = vunpack.c.l.b16 %v409
        %v442 = vunpack.c.l.b16 %v410
        %v443 = vunpack.c.l.b16 %v411
        %v444 = vunpack.c.l.b16 %v412
        %v445 = vunpack.c.l.b16 %v413
        %v446 = vunpack.c.l.b16 %v414
        %v447 = vunpack.c.l.b16 %v415
        %v448 = vunpack.c.l.b16 %v416
        %v449 = vunpack.c.l.b16 %v417
        %v450 = vpack.c.b16 %v435, %v434
        %v451 = vpack.c.b16 %v437, %v436
        %v452 = vpack.c.b16 %v439, %v438
        %v453 = vpack.c.b16 %v441, %v440
        %v454 = vpack.c.b16 %v443, %v442
        %v455 = vpack.c.b16 %v445, %v444
        %v456 = vpack.c.b16 %v447, %v446
        %v457 = vpack.c.b16 %v449, %v448
        %466 = vmatprep.subr.bf16.mxu0 0
        %467 = vmatpush1.bf16.msra.mxu0 %v450
        %468 = vmatprep.subr.bf16.mxu0 0
        %469 = vmatpush1.bf16.msra.mxu0 %v451
        %470 = vmatprep.subr.bf16.mxu0 0
        %471 = vmatpush1.bf16.msra.mxu0 %v452
        %472 = vmatprep.subr.bf16.mxu0 0
        %473 = vmatpush1.bf16.msra.mxu0 %v453
        %474 = vmatprep.subr.bf16.mxu0 0
        %475 = vmatpush1.bf16.msra.mxu0 %v454
        %476 = vmatprep.subr.bf16.mxu0 0
        %477 = vmatpush1.bf16.msra.mxu0 %v455
        %478 = vmatprep.subr.bf16.mxu0 0
        %479 = vmatpush1.bf16.msra.mxu0 %v456
        %480 = vmatprep.subr.bf16.mxu0 0
        %481 = vmatpush1.bf16.msra.mxu0 %v457
        %482 = vmatprep.subr.bf16.mxu0 0
        %483 = vmatpush1.bf16.msra.mxu0 0
        %484 = vmatprep.subr.bf16.mxu0 0
        %485 = vmatpush1.bf16.msra.mxu0 0
        %486 = vmatprep.subr.bf16.mxu0 0
        %487 = vmatpush1.bf16.msra.mxu0 0
        %488 = vmatprep.subr.bf16.mxu0 0
        %489 = vmatpush1.bf16.msra.mxu0 0
        %490 = vmatprep.subr.bf16.mxu0 0
        %491 = vmatpush1.bf16.msra.mxu0 0
        %492 = vmatprep.subr.bf16.mxu0 0
        %493 = vmatpush1.bf16.msra.mxu0 0
        %494 = vmatprep.subr.bf16.mxu0 0
        %495 = vmatpush1.bf16.msra.mxu0 0
        %496 = vmatprep.subr.bf16.mxu0 0
        %497 = vmatpush1.bf16.msra.mxu0 0
        %498 = vmatprep.mubr.bf16.mxu0 0
        %499 = vmatmul.mubr.bf16.gmra.mrb[0].mxu0 %v401
        %v500 = vpop.f32.mrb[0].mxu0
        %v501 = vadd.f32 0.0, %v500
        %v502 = vpop.f32.mrb[0].mxu0
        %v503 = vpop.f32.mrb[0].mxu0
        %v504 = vadd.f32 0.0, %v503
        %v505 = vpop.f32.mrb[0].mxu0
        %506 = vdwg.mxu0
        %v507 = vadd.f32 %v399, %v501
        %v508 = vadd.f32 %v400, %v504
        %509 = vst [vmem:[#allocation2] sm:$0xff] %v507
        %510 = vst [vmem:[#allocation2 + $0x8] sm:$0xff] %v508
        %p511 = scmp.eq.s32.totalorder %s28, 1
        // Predicated region
        $region69: #{tpu_custom_call.1} parent=47 // pred_check
          %p512 = pneg %p511
        $region70: #{tpu_custom_call.1} parent=47 // pred_check_branch
          %514 = sbr.rel (%p512) target = $region72
        $region71: #{tpu_custom_call.1} parent=47 // pred_region
          %v515 = vld [vmem:[#allocation2] sm:$0xff]
          %v516 = vld [vmem:[#allocation2 + $0x8] sm:$0xff]
          %v517 = vld [vmem:[%s4] sm:$0x1]
          %v519 = vlaneseq
          %v520 = vshrl.u32 %v519, 7
          %v521 = vsub.s32 0, %v520
          %v522 = vrot.slane %v517, %v521
          %v524 = vadd.f32 %v515, %v522
          %v525 = vadd.f32 %v516, %v522
          %v526 = vmax.f32 %v524, 0.0
          %v527 = vmax.f32 %v525, 0.0
          %v528 = vpack.c.bf16 %v527, %v526
          %v529 = vld [vmem:[#allocation9] sm:$0xff]
          %v530 = vld [vmem:[#allocation9 + $0x8] sm:$0xff]
          %v531 = vld [vmem:[#allocation9 + $0x10] sm:$0xff]
          %v532 = vld [vmem:[#allocation9 + $0x18] sm:$0xff]
          %v533 = vld [vmem:[#allocation9 + $0x20] sm:$0xff]
          %v534 = vld [vmem:[#allocation9 + $0x28] sm:$0xff]
          %v535 = vld [vmem:[#allocation9 + $0x30] sm:$0xff]
          %v536 = vld [vmem:[#allocation9 + $0x38] sm:$0xff]
          %v537 = vld [vmem:[#allocation9 + $0x40] sm:$0xff]
          %v538 = vld [vmem:[#allocation9 + $0x48] sm:$0xff]
          %v539 = vld [vmem:[#allocation9 + $0x50] sm:$0xff]
          %v540 = vld [vmem:[#allocation9 + $0x58] sm:$0xff]
          %v541 = vld [vmem:[#allocation9 + $0x60] sm:$0xff]
          %v542 = vld [vmem:[#allocation9 + $0x68] sm:$0xff]
          %v543 = vld [vmem:[#allocation9 + $0x70] sm:$0xff]
          %v544 = vld [vmem:[#allocation9 + $0x78] sm:$0xff]
          %v545 = vld [vmem:[%s6] sm:$0x3]
          %v547 = vlaneseq
          %v548 = vshrl.u32 %v547, 7
          %v549 = vsub.s32 0, %v548
          %v550 = vrot.slane %v545, %v549
          %v551 = vlaneseq
          %v552 = vshrl.u32 %v551, 7
          %v553 = vsub.s32 1, %v552
          %v554 = vrot.slane %v545, %v553
          %v573 = vunpack.c.l.b16 %v529
          %v574 = vunpack.c.h.b16 %v529
          %v575 = vunpack.c.l.b16 %v530
          %v576 = vunpack.c.h.b16 %v530
          %v577 = vunpack.c.l.b16 %v531
          %v578 = vunpack.c.h.b16 %v531
          %v579 = vunpack.c.l.b16 %v532
          %v580 = vunpack.c.h.b16 %v532
          %v581 = vunpack.c.l.b16 %v533
          %v582 = vunpack.c.h.b16 %v533
          %v583 = vunpack.c.l.b16 %v534
          %v584 = vunpack.c.h.b16 %v534
          %v585 = vunpack.c.l.b16 %v535
          %v586 = vunpack.c.h.b16 %v535
          %v587 = vunpack.c.l.b16 %v536
          %v588 = vunpack.c.h.b16 %v536
          %v589 = vunpack.c.l.b16 %v537
          %v590 = vunpack.c.h.b16 %v537
          %v591 = vunpack.c.l.b16 %v538
          %v592 = vunpack.c.h.b16 %v538
          %v593 = vunpack.c.l.b16 %v539
          %v594 = vunpack.c.h.b16 %v539
          %v595 = vunpack.c.l.b16 %v540
          %v596 = vunpack.c.h.b16 %v540
          %v597 = vunpack.c.l.b16 %v541
          %v598 = vunpack.c.h.b16 %v541
          %v599 = vunpack.c.l.b16 %v542
          %v600 = vunpack.c.h.b16 %v542
          %v601 = vunpack.c.l.b16 %v543
          %v602 = vunpack.c.h.b16 %v543
          %v603 = vunpack.c.l.b16 %v544
          %v604 = vunpack.c.h.b16 %v544
          %v605 = vpack.c.b16 %v575, %v573
          %v606 = vpack.c.b16 %v576, %v574
          %v607 = vpack.c.b16 %v579, %v577
          %v608 = vpack.c.b16 %v580, %v578
          %v609 = vpack.c.b16 %v583, %v581
          %v610 = vpack.c.b16 %v584, %v582
          %v611 = vpack.c.b16 %v587, %v585
          %v612 = vpack.c.b16 %v588, %v586
          %v613 = vpack.c.b16 %v591, %v589
          %v614 = vpack.c.b16 %v592, %v590
          %v615 = vpack.c.b16 %v595, %v593
          %v616 = vpack.c.b16 %v596, %v594
          %v617 = vpack.c.b16 %v599, %v597
          %v618 = vpack.c.b16 %v600, %v598
          %v619 = vpack.c.b16 %v603, %v601
          %v620 = vpack.c.b16 %v604, %v602
          %637 = vmatprep.subr.bf16.mxu0 %v606
          %638 = vmatpush1.bf16.msra.mxu0 %v605
          %639 = vmatprep.subr.bf16.mxu0 %v608
          %640 = vmatpush1.bf16.msra.mxu0 %v607
          %641 = vmatprep.subr.bf16.mxu0 %v610
          %642 = vmatpush1.bf16.msra.mxu0 %v609
          %643 = vmatprep.subr.bf16.mxu0 %v612
          %644 = vmatpush1.bf16.msra.mxu0 %v611
          %645 = vmatprep.subr.bf16.mxu0 %v614
          %646 = vmatpush1.bf16.msra.mxu0 %v613
          %647 = vmatprep.subr.bf16.mxu0 %v616
          %648 = vmatpush1.bf16.msra.mxu0 %v615
          %649 = vmatprep.subr.bf16.mxu0 %v618
          %650 = vmatpush1.bf16.msra.mxu0 %v617
          %651 = vmatprep.subr.bf16.mxu0 %v620
          %652 = vmatpush1.bf16.msra.mxu0 %v619
          %653 = vmatprep.subr.bf16.mxu0 0
          %654 = vmatpush1.bf16.msra.mxu0 0
          %655 = vmatprep.subr.bf16.mxu0 0
          %656 = vmatpush1.bf16.msra.mxu0 0
          %657 = vmatprep.subr.bf16.mxu0 0
          %658 = vmatpush1.bf16.msra.mxu0 0
          %659 = vmatprep.subr.bf16.mxu0 0
          %660 = vmatpush1.bf16.msra.mxu0 0
          %661 = vmatprep.subr.bf16.mxu0 0
          %662 = vmatpush1.bf16.msra.mxu0 0
          %663 = vmatprep.subr.bf16.mxu0 0
          %664 = vmatpush1.bf16.msra.mxu0 0
          %665 = vmatprep.subr.bf16.mxu0 0
          %666 = vmatpush1.bf16.msra.mxu0 0
          %667 = vmatprep.subr.bf16.mxu0 0
          %668 = vmatpush1.bf16.msra.mxu0 0
          %669 = vmatprep.mubr.bf16.mxu0 0
          %670 = vmatmul.mubr.bf16.gmra.mrb[0].mxu0 %v528
          %v671 = vpop.f32.mrb[0].mxu0
          %v672 = vadd.f32 %v550, %v671
          %v673 = vpop.f32.mrb[0].mxu0
          %v674 = vadd.f32 %v554, %v673
          %v675 = vpop.f32.mrb[0].mxu0
          %v676 = vadd.f32 %v550, %v675
          %v677 = vpop.f32.mrb[0].mxu0
          %v678 = vadd.f32 %v554, %v677
          %679 = vdwg.mxu0
          %v680 = vmul.f32 %v674, 1.442695
          %v681 = vpow.pop %v680
          %v682 = vmul.f32 %v678, 1.442695
          %v683 = vpow.pop %v682
          %v684 = vadd.f32 %v681, 0.0001
          %v685 = vadd.f32 %v683, 0.0001
          %v686 = vrsqrt.pop %v684
          %v687 = vmul.f32 %v684, %v686
          %vm688 = vcmp.eq.f32.partialorder %v684, inf
          %v689 = vsel %vm688, %v684, %v687
          %vm690 = vcmp.eq.f32.partialorder %v684, 0.0
          %v691 = vand.u32 %v684, 2147483648
          %v692 = vsel %vm690, %v691, %v689
          %v693 = vrsqrt.pop %v685
          %v694 = vmul.f32 %v685, %v693
          %vm695 = vcmp.eq.f32.partialorder %v685, inf
          %v696 = vsel %vm695, %v685, %v694
          %vm697 = vcmp.eq.f32.partialorder %v685, 0.0
          %v698 = vand.u32 %v685, 2147483648
          %v699 = vsel %vm697, %v698, %v696
          %v700 = vld [vmem:[#allocation6] sm:$0xff]
          %v701 = vld [vmem:[#allocation6 + $0x8] sm:$0xff]
          %v702 = vmul.f32 %v692, %v700
          %v703 = vmul.f32 %v699, %v701
          %v704 = vadd.f32 %v672, %v702
          %v705 = vadd.f32 %v676, %v703
          %v706 = vld [vmem:[%s2] sm:$0x1]
          %v707 = vld [vmem:[%s2 + $0x1] sm:$0x1]
          %v708 = vlog2.pop %v684
          %v709 = vmul.f32 %v708, 0.6931472
          %v710 = vlog2.pop %v685
          %v711 = vmul.f32 %v710, 0.6931472
          %v712 = vmul.f32 %v709, -0.5
          %v713 = vmul.f32 %v711, -0.5
          %v714 = vmul.f32 %v672, %v672
          %v715 = vmul.f32 %v676, %v676
          %v716 = vadd.f32 %v684, %v714
          %v717 = vadd.f32 %v685, %v715
          %v718 = vmul.f32 %v716, 0.5
          %v719 = vmul.f32 %v717, 0.5
          %v720 = vadd.f32 %v712, %v718
          %v721 = vadd.f32 %v713, %v719
          %v722 = vsub.f32 %v720, 0.5
          %v723 = vsub.f32 %v721, 0.5
          %v724 = vlaneseq
          %v725 = vshrl.u32 %v724, 7
          %v726 = vsub.s32 0, %v725
          %v727 = vrot.slane %v706, %v726
          %v728 = vmul.f32 %v722, %v727
          %v729 = vmul.f32 %v723, %v727
          %730 = vadd.xlane.f32.xlu0 %v728
          %v731 = vpop.xlane.xlu0 %730
          %732 = vadd.xlane.f32.xlu0 %v729
          %v733 = vpop.xlane.xlu0 %732
          %v734 = vlaneseq
          %v735 = vshrl.u32 %v734, 7
          %v736 = vsub.s32 0, %v735
          %v737 = vrot.slane %v707, %v736
          %v738 = vmul.f32 %v731, %v737
          %v739 = vmul.f32 %v733, %v737
          %v740 = vadd.f32 %v672, %v738
          %v741 = vadd.f32 %v676, %v739
          %742 = vst [vmem:[#allocation10] sm:$0xff] %v740
          %743 = vst [vmem:[#allocation10 + $0x8] sm:$0xff] %v684
          %744 = vst [vmem:[#allocation10 + $0x10] sm:$0xff] %v704
          %745 = vst [vmem:[#allocation10 + $0x18] sm:$0xff] %v741
          %746 = vst [vmem:[#allocation10 + $0x20] sm:$0xff] %v685
          %747 = vst [vmem:[#allocation10 + $0x28] sm:$0xff] %v705
        $region72: #{tpu_custom_call.1} parent=47 // pred_fallthru
          _
        // Predicated region
        $region73: #{tpu_custom_call.1} parent=47 // pred_check
          %p748 = pneg %p217
        $region74: #{tpu_custom_call.1} parent=47 // pred_check_branch
          %750 = sbr.rel (%p748) target = $region76
        $region75: #{tpu_custom_call.1} parent=47 // pred_region
          %s751 = smul.u32 2, %s27
          %s753 = ssub.s32 768, 768
          %754 = vsyncadd [#allocation5], %s753
          %s755 = smul.addr %s751, 3
          %s756 = smul.addr %s755, 128
          %s757 = scalar_lea.hbm %s7, %s756
          %s758 = sshll.u32 [#allocation10], 4
          %s759 = int_to_ptr.vmem [resolvable:$true] %s758
          %764 = dma.vmem_to_hbm [thread:$0]  %s759, 768, %s757, [#allocation5], 384, 384, 24
        $region76: #{tpu_custom_call.1} parent=47 // pred_fallthru
          _
        // Predicated region
        $region77: #{tpu_custom_call.1} parent=47 // pred_check
          %p765 = pneg %p217
        $region78: #{tpu_custom_call.1} parent=47 // pred_check_branch
          %767 = sbr.rel (%p765) target = $region80
        $region79: #{tpu_custom_call.1} parent=47 // pred_region
          %768 = dma.done [#allocation5], 768
        $region80: #{tpu_custom_call.1} parent=47 // pred_fallthru
          _
      $region48: #{tpu_custom_call.1} parent=5 // pred_fallthru
        _
      %p769 = scmp.le.s32.totalorder 2, %s18
      // Predicated region
      $region81: #{tpu_custom_call.1} parent=5 // pred_check
        %p770 = pneg %p769
      $region82: #{tpu_custom_call.1} parent=5 // pred_check_branch
        %772 = sbr.rel (%p770) target = $region84
      $region83: #{tpu_custom_call.1} parent=5 // pred_region
        %s773 = ssub.s32 %s18, 2
      $region84: #{tpu_custom_call.1} parent=5 // pred_fallthru
        _
    $region6: #{tpu_custom_call.1} parent=1 // loop_footer
      %s22 = sadd.s32 1, %s18
    $region7: #{tpu_custom_call.1} parent=1 // loop_footer_branch
      %17 = sbr.rel target = $region3
    $region8: #{tpu_custom_call.1} parent=1 // loop_exit
      _
    %774 = vsyncpa [#allocation4], 1
    %s775 = scalar_lea.sflag [#allocation4], 1
    %776 = vsyncpa %s775, 1
    %777 = vsyncpa [#allocation7], 1
    %778 = vsyncpa [#allocation5], 1
    %s779 = scalar_lea.sflag [#allocation5], 1
    %780 = vsyncpa %s779, 1

// kernel: tpu_custom_call.1
$region0: #{tpu_custom_call.1}
  #allocation0 [shape = 'u32[]', space=smem, size = 0x4, offset = 0x4, fixed_abs, tag = 'smem constant byte address 0x4 - core index']
  #allocation1 [shape = 'u32[144,128]{1,0:T(1,128)}', space=vmem, size = 0x12000, scoped, tag = 'internal scratch']
  #allocation2 [shape = 'f32[16,128]{1,0:T(8,128)}', space=vmem, size = 0x2000, scoped, tag = 'scratch operand']
  %s0 = inlined_call_operand.hbm [shape: f32[16,256], index: 0, kind: input, shape index: {}]
  %s1 = inlined_call_operand.hbm [shape: f32[16,128], index: 1, kind: input, shape index: {}]
  %s2 = inlined_call_operand.vmem [shape: f32[2,128], index: 2, kind: input, shape index: {}]
  %s3 = inlined_call_operand.hbm [shape: bf16[256,128], index: 3, kind: input, shape index: {}]
  %s4 = inlined_call_operand.vmem [shape: f32[1,128], index: 4, kind: input, shape index: {}]
  %s5 = inlined_call_operand.hbm [shape: bf16[128,256], index: 5, kind: input, shape index: {}]
  %s6 = inlined_call_operand.vmem [shape: f32[1,256], index: 6, kind: input, shape index: {}]
  %s7 = inlined_call_operand.hbm [shape: f32[16,384], index: 7, kind: output, shape index: {}]
  %s8 = sld [smem:[#allocation0]]
  $region85: #{tpu_custom_call.1} parent=0
    _
  %s10 = ssub.s32 1, %s8
  %s11 = scalar_select 0, %s10, %s8
  $region1: #{tpu_custom_call.1} parent=0
    #allocation3 [shape = 'u8[16384]{0}', space=vmem, size = 0x4000, scoped, tag = 'input window, operand 0']
    #allocation4 [shape = 's32[2]{0}', space=sflag, size = 0x8, scoped, tag = 'scoped memory for tpu_custom_call.1']
    #allocation5 [shape = 's32[2]{0}', space=sflag, size = 0x8, scoped, tag = 'scoped memory for tpu_custom_call.1']
    #allocation6 [shape = 'u8[8192]{0}', space=vmem, size = 0x2000, scoped, tag = 'input window, operand 1, single buffered']
    #allocation7 [shape = 's32[1]{0}', space=sflag, size = 0x4, scoped, tag = 'scoped memory for tpu_custom_call.1']
    #allocation8 [shape = 'u8[65536]{0}', space=vmem, size = 0x10000, scoped, tag = 'input window, operand 3']
    #allocation9 [shape = 'u8[65536]{0}', space=vmem, size = 0x10000, scoped, tag = 'input window, operand 5, single buffered']
    #allocation10 [shape = 'u8[24576]{0}', space=vmem, size = 0x6000, scoped, tag = 'output window, operand 0, single buffered']
    %12 = vsyncpa [#allocation4], 0
    %s13 = scalar_lea.sflag [#allocation4], 1
    %14 = vsyncpa %s13, 0
    %15 = vsyncpa [#allocation7], 0
    %16 = vsyncpa [#allocation5], 0
    loop: start=0, step=1, limit=4
    $region2: #{tpu_custom_call.1} parent=1 // loop_pre_header
      _
    $region3: #{tpu_custom_call.1} parent=1 // loop_header
      %s18 = sphi 0, %s22
      %p19 = scmp.ge.s32.totalorder %s18, 4
      %s25 = sphi 0, %s37
      %s26 = sphi 0, %s33
      %s27 = sphi 0, %s25
      %s28 = sphi 0, %s26
      %s29 = sphi 0, %s27
      %s30 = sphi 0, %s28
      %s42 = sphi 0, %s44
      %s45 = sphi 0, %s42
      %s46 = sphi 0, %s45
      %s62 = sphi 0, %s46
      %s68 = sphi 0, %s70
      %s71 = sphi 0, %s68
      %s72 = sphi 0, %s71
      %s88 = sphi 0, %s72
      %s92 = sphi 0, %s92
      %s94 = sphi 0, %s92
      %s95 = sphi 0, %s94
      %s109 = sphi 0, %s95
      %s115 = sphi 0, %s117
      %s118 = sphi 0, %s115
      %s119 = sphi 0, %s118
      %s135 = sphi 0, %s119
      %s139 = sphi 0, %s139
      %s141 = sphi 0, %s139
      %s142 = sphi 0, %s141
      %s156 = sphi 0, %s142
      %s160 = sphi 0, %s160
      %s162 = sphi 0, %s160
      %s163 = sphi 0, %s162
      %s177 = sphi 0, %s163
      %s181 = sphi 0, %s181
      %s183 = sphi 0, %s181
      %s184 = sphi 0, %s183
      %s198 = sphi 0, %s184
      %s204 = sphi 0, %s206
      %s207 = sphi 0, %s204
      %s208 = sphi 0, %s207
      %s224 = sphi 0, %s208
    $region4: #{tpu_custom_call.1} parent=1 // loop_header_branch
      %21 = sbr.rel (%p19) target = $region8
    $region5: #{tpu_custom_call.1} parent=1 // loop_body
      %s23 = ssub.s32 %s18, 1
      %s24 = ssub.s32 %s18, 2
      %s31 = sadd.s32 1, %s26
      %p32 = scmp.ge.s32.totalorder %s31, 2
      %s33 = scalar_select %p32, 0, %s31
      %s34 = sadd.s32 1, %s25
      %s35 = scalar_select %p32, %s34, %s25
      %p36 = scmp.ge.s32.totalorder %s35, 1
      %s37 = scalar_select %p36, 0, %s35
      %s38 = ssub.s32 %s25, %s37
      %s39 = ssub.s32 %s26, %s33
      %s40 = sor.u32 %s38, %s39
      %p41 = scmp.eq.s32.totalorder %s40, 0
      %s43 = sadd.s32 %s42, 1
      %s44 = scalar_select %p41, %s42, %s43
      %p47 = pneg %p41
      %p48 = scmp.eq.s32.totalorder %s18, 1
      %p49 = por %p47, %p48
      %p50 = scmp.ne.s32.totalorder %s42, %s45
      %p51 = scmp.eq.s32.totalorder %s18, 0
      %p52 = por %p50, %p51
      %p53 = scmp.ne.s32.totalorder %s42, %s45
      %p54 = scmp.eq.s32.totalorder %s23, 1
      %p55 = por %p53, %p54
      %p56 = scmp.ne.s32.totalorder %s45, %s46
      %p57 = scmp.eq.s32.totalorder %s23, 0
      %p58 = por %p56, %p57
      %p59 = scmp.ne.s32.totalorder %s45, %s46
      %p60 = scmp.eq.s32.totalorder %s24, 1
      %p61 = por %p59, %p60
      %p63 = scmp.ne.s32.totalorder %s46, %s62
      %p64 = scmp.eq.s32.totalorder %s24, 0
      %p65 = por %p63, %p64
      %s66 = ssub.s32 %s25, %s37
      %p67 = scmp.eq.s32.totalorder %s66, 0
      %s69 = sadd.s32 %s68, 1
      %s70 = scalar_select %p67, %s68, %s69
      %p73 = pneg %p67
      %p74 = scmp.eq.s32.totalorder %s18, 1
      %p75 = por %p73, %p74
      %p76 = scmp.ne.s32.totalorder %s68, %s71
      %p77 = scmp.eq.s32.totalorder %s18, 0
      %p78 = por %p76, %p77
      %p79 = scmp.ne.s32.totalorder %s68, %s71
      %p80 = scmp.eq.s32.totalorder %s23, 1
      %p81 = por %p79, %p80
      %p82 = scmp.ne.s32.totalorder %s71, %s72
      %p83 = scmp.eq.s32.totalorder %s23, 0
      %p84 = por %p82, %p83
      %p85 = scmp.ne.s32.totalorder %s71, %s72
      %p86 = scmp.eq.s32.totalorder %s24, 1
      %p87 = por %p85, %p86
      %p89 = scmp.ne.s32.totalorder %s72, %s88
      %p90 = scmp.eq.s32.totalorder %s24, 0
      %p91 = por %p89, %p90
      %s93 = sadd.s32 %s92, 1
      %p96 = scmp.eq.s32.totalorder %s18, 1
      %p97 = scmp.ne.s32.totalorder %s92, %s94
      %p98 = scmp.eq.s32.totalorder %s18, 0
      %p99 = por %p97, %p98
      %p100 = scmp.ne.s32.totalorder %s92, %s94
      %p101 = scmp.eq.s32.totalorder %s23, 1
      %p102 = por %p100, %p101
      %p103 = scmp.ne.s32.totalorder %s94, %s95
      %p104 = scmp.eq.s32.totalorder %s23, 0
      %p105 = por %p103, %p104
      %p106 = scmp.ne.s32.totalorder %s94, %s95
      %p107 = scmp.eq.s32.totalorder %s24, 1
      %p108 = por %p106, %p107
      %p110 = scmp.ne.s32.totalorder %s95, %s109
      %p111 = scmp.eq.s32.totalorder %s24, 0
      %p112 = por %p110, %p111
      %s113 = ssub.s32 %s26, %s33
      %p114 = scmp.eq.s32.totalorder %s113, 0
      %s116 = sadd.s32 %s115, 1
      %s117 = scalar_select %p114, %s115, %s116
      %p120 = pneg %p114
      %p121 = scmp.eq.s32.totalorder %s18, 1
      %p122 = por %p120, %p121
      %p123 = scmp.ne.s32.totalorder %s115, %s118
      %p124 = scmp.eq.s32.totalorder %s18, 0
      %p125 = por %p123, %p124
      %p126 = scmp.ne.s32.totalorder %s115, %s118
      %p127 = scmp.eq.s32.totalorder %s23, 1
      %p128 = por %p126, %p127
      %p129 = scmp.ne.s32.totalorder %s118, %s119
      %p130 = scmp.eq.s32.totalorder %s23, 0
      %p131 = por %p129, %p130
      %p132 = scmp.ne.s32.totalorder %s118, %s119
      %p133 = scmp.eq.s32.totalorder %s24, 1
      %p134 = por %p132, %p133
      %p136 = scmp.ne.s32.totalorder %s119, %s135
      %p137 = scmp.eq.s32.totalorder %s24, 0
      %p138 = por %p136, %p137
      %s140 = sadd.s32 %s139, 1
      %p143 = scmp.eq.s32.totalorder %s18, 1
      %p144 = scmp.ne.s32.totalorder %s139, %s141
      %p145 = scmp.eq.s32.totalorder %s18, 0
      %p146 = por %p144, %p145
      %p147 = scmp.ne.s32.totalorder %s139, %s141
      %p148 = scmp.eq.s32.totalorder %s23, 1
      %p149 = por %p147, %p148
      %p150 = scmp.ne.s32.totalorder %s141, %s142
      %p151 = scmp.eq.s32.totalorder %s23, 0
      %p152 = por %p150, %p151
      %p153 = scmp.ne.s32.totalorder %s141, %s142
      %p154 = scmp.eq.s32.totalorder %s24, 1
      %p155 = por %p153, %p154
      %p157 = scmp.ne.s32.totalorder %s142, %s156
      %p158 = scmp.eq.s32.totalorder %s24, 0
      %p159 = por %p157, %p158
      %s161 = sadd.s32 %s160, 1
      %p164 = scmp.eq.s32.totalorder %s18, 1
      %p165 = scmp.ne.s32.totalorder %s160, %s162
      %p166 = scmp.eq.s32.totalorder %s18, 0
      %p167 = por %p165, %p166
      %p168 = scmp.ne.s32.totalorder %s160, %s162
      %p169 = scmp.eq.s32.totalorder %s23, 1
      %p170 = por %p168, %p169
      %p171 = scmp.ne.s32.totalorder %s162, %s163
      %p172 = scmp.eq.s32.totalorder %s23, 0
      %p173 = por %p171, %p172
      %p174 = scmp.ne.s32.totalorder %s162, %s163
      %p175 = scmp.eq.s32.totalorder %s24, 1
      %p176 = por %p174, %p175
      %p178 = scmp.ne.s32.totalorder %s163, %s177
      %p179 = scmp.eq.s32.totalorder %s24, 0
      %p180 = por %p178, %p179
      %s182 = sadd.s32 %s181, 1
      %p185 = scmp.eq.s32.totalorder %s18, 1
      %p186 = scmp.ne.s32.totalorder %s181, %s183
      %p187 = scmp.eq.s32.totalorder %s18, 0
      %p188 = por %p186, %p187
      %p189 = scmp.ne.s32.totalorder %s181, %s183
      %p190 = scmp.eq.s32.totalorder %s23, 1
      %p191 = por %p189, %p190
      %p192 = scmp.ne.s32.totalorder %s183, %s184
      %p193 = scmp.eq.s32.totalorder %s23, 0
      %p194 = por %p192, %p193
      %p195 = scmp.ne.s32.totalorder %s183, %s184
      %p196 = scmp.eq.s32.totalorder %s24, 1
      %p197 = por %p195, %p196
      %p199 = scmp.ne.s32.totalorder %s184, %s198
      %p200 = scmp.eq.s32.totalorder %s24, 0
      %p201 = por %p199, %p200
      %s202 = ssub.s32 %s25, %s37
      %p203 = scmp.eq.s32.totalorder %s202, 0
      %s205 = sadd.s32 %s204, 1
      %s206 = scalar_select %p203, %s204, %s205
      %p209 = pneg %p203
      %p210 = scmp.eq.s32.totalorder %s18, 1
      %p211 = por %p209, %p210
      %p212 = scmp.ne.s32.totalorder %s204, %s207
      %p213 = scmp.eq.s32.totalorder %s18, 0
      %p214 = por %p212, %p213
      %p215 = scmp.ne.s32.totalorder %s204, %s207
      %p216 = scmp.eq.s32.totalorder %s23, 1
      %p217 = por %p215, %p216
      %p218 = scmp.ne.s32.totalorder %s207, %s208
      %p219 = scmp.eq.s32.totalorder %s23, 0
      %p220 = por %p218, %p219
      %p221 = scmp.ne.s32.totalorder %s207, %s208
      %p222 = scmp.eq.s32.totalorder %s24, 1
      %p223 = por %p221, %p222
      %p225 = scmp.ne.s32.totalorder %s208, %s224
      %p226 = scmp.eq.s32.totalorder %s24, 0
      %p227 = por %p225, %p226
      %p228 = scmp.le.s32.totalorder 1, %s18
      %p229 = scmp.lt.s32.totalorder %s18, 3
      %p230 = pnand %p228, %p229
      %p231 = pneg %p230
      // Predicated region
      $region9: #{tpu_custom_call.1} parent=5 // pred_check
        _
      $region10: #{tpu_custom_call.1} parent=5 // pred_check_branch
        %233 = sbr.rel (%p230) target = $region12
      $region11: #{tpu_custom_call.1} parent=5 // pred_region
        %s234 = ssub.s32 %s18, 1
        // Predicated region
        $region13: #{tpu_custom_call.1} parent=11 // pred_check
          %p235 = pneg %p84
        $region14: #{tpu_custom_call.1} parent=11 // pred_check_branch
          %237 = sbr.rel (%p235) target = $region16
        $region15: #{tpu_custom_call.1} parent=11 // pred_region
          %s238 = smul.u32 2, %s27
          %s240 = ssub.s32 256, 256
          %241 = vsyncadd [#allocation7], %s240
          %s242 = smul.addr %s238, 128
          %s243 = scalar_lea.hbm %s1, %s242
          %s244 = sshll.u32 [#allocation6], 4
          %s245 = int_to_ptr.vmem [resolvable:$true] %s244
          %250 = dma.hbm_to_vmem [thread:$0]  %s243, 256, %s245, [#allocation7], 128, 128, 8
        $region16: #{tpu_custom_call.1} parent=11 // pred_fallthru
          _
        // Predicated region
        $region17: #{tpu_custom_call.1} parent=11 // pred_check
          %p251 = pneg %p105
        $region18: #{tpu_custom_call.1} parent=11 // pred_check_branch
          %253 = sbr.rel (%p251) target = $region20
        $region19: #{tpu_custom_call.1} parent=11 // pred_region
          _
        $region20: #{tpu_custom_call.1} parent=11 // pred_fallthru
          _
        // Predicated region
        $region21: #{tpu_custom_call.1} parent=11 // pred_check
          %p254 = pneg %p152
        $region22: #{tpu_custom_call.1} parent=11 // pred_check_branch
          %256 = sbr.rel (%p254) target = $region24
        $region23: #{tpu_custom_call.1} parent=11 // pred_region
          _
        $region24: #{tpu_custom_call.1} parent=11 // pred_fallthru
          _
        // Predicated region
        $region25: #{tpu_custom_call.1} parent=11 // pred_check
          %p257 = pneg %p173
        $region26: #{tpu_custom_call.1} parent=11 // pred_check_branch
          %259 = sbr.rel (%p257) target = $region28
        $region27: #{tpu_custom_call.1} parent=11 // pred_region
          %s261 = ssub.s32 2048, 2048
          %262 = vsyncadd [#allocation7], %s261
          %s263 = sshll.u32 [#allocation9], 4
          %s264 = int_to_ptr.vmem [resolvable:$true] %s263
          %269 = dma.hbm_to_vmem [thread:$0]  %s5, 2048, %s264, [#allocation7], 128, 128, 8
        $region28: #{tpu_custom_call.1} parent=11 // pred_fallthru
          _
        // Predicated region
        $region29: #{tpu_custom_call.1} parent=11 // pred_check
          %p270 = pneg %p194
        $region30: #{tpu_custom_call.1} parent=11 // pred_check_branch
          %272 = sbr.rel (%p270) target = $region32
        $region31: #{tpu_custom_call.1} parent=11 // pred_region
          _
        $region32: #{tpu_custom_call.1} parent=11 // pred_fallthru
          _
      $region12: #{tpu_custom_call.1} parent=5 // pred_fallthru
        _
      %p273 = scmp.lt.s32.totalorder %s18, 2
      // Predicated region
      $region33: #{tpu_custom_call.1} parent=5 // pred_check
        %p274 = pneg %p273
      $region34: #{tpu_custom_call.1} parent=5 // pred_check_branch
        %276 = sbr.rel (%p274) target = $region36
      $region35: #{tpu_custom_call.1} parent=5 // pred_region
        // Predicated region
        $region37: #{tpu_custom_call.1} parent=35 // pred_check
          %p277 = pneg %p52
        $region38: #{tpu_custom_call.1} parent=35 // pred_check_branch
          %279 = sbr.rel (%p277) target = $region40
        $region39: #{tpu_custom_call.1} parent=35 // pred_region
          %s280 = sand.u32 %s18, 1
          %s281 = scalar_lea.sflag [#allocation4], %s280
          %s282 = sand.u32 %s42, 1
          %s283 = smul.addr %s282, 16
          %s284 = scalar_lea.vmem [#allocation3], %s283
          %s285 = smul.u32 2, %s25
          %s287 = ssub.s32 256, 256
          %288 = vsyncadd %s281, %s287
          %s289 = smul.addr %s285, 2
          %s290 = sadd.s32 %s26, %s289
          %s291 = smul.addr %s290, 128
          %s292 = scalar_lea.hbm %s0, %s291
          %s293 = sshll.u32 %s284, 4
          %s294 = int_to_ptr.vmem [resolvable:$true] %s293
          %299 = dma.hbm_to_vmem [thread:$0]  %s292, 256, %s294, %s281, 256, 128, 8
        $region40: #{tpu_custom_call.1} parent=35 // pred_fallthru
          _
        // Predicated region
        $region41: #{tpu_custom_call.1} parent=35 // pred_check
          %p300 = pneg %p125
        $region42: #{tpu_custom_call.1} parent=35 // pred_check_branch
          %302 = sbr.rel (%p300) target = $region44
        $region43: #{tpu_custom_call.1} parent=35 // pred_region
          %s303 = sand.u32 %s18, 1
          %s304 = scalar_lea.sflag [#allocation4], %s303
          %s305 = sand.u32 %s115, 1
          %s306 = smul.addr %s305, 64
          %s307 = scalar_lea.vmem [#allocation8], %s306
          %s308 = smul.u32 16, %s26
          %s310 = ssub.s32 1024, 1024
          %311 = vsyncadd %s304, %s310
          %s312 = smul.addr %s308, 64
          %s313 = scalar_lea.hbm %s3, %s312
          %s314 = sshll.u32 %s307, 4
          %s315 = int_to_ptr.vmem [resolvable:$true] %s314
          %320 = dma.hbm_to_vmem [thread:$0]  %s313, 1024, %s315, %s304, 64, 64, 4
        $region44: #{tpu_custom_call.1} parent=35 // pred_fallthru
          _
      $region36: #{tpu_custom_call.1} parent=5 // pred_fallthru
        _
      %p321 = scmp.le.s32.totalorder 1, %s18
      %p322 = scmp.lt.s32.totalorder %s18, 3
      %p323 = pnand %p321, %p322
      %p324 = pneg %p323
      // Predicated region
      $region45: #{tpu_custom_call.1} parent=5 // pred_check
        _
      $region46: #{tpu_custom_call.1} parent=5 // pred_check_branch
        %326 = sbr.rel (%p323) target = $region48
      $region47: #{tpu_custom_call.1} parent=5 // pred_region
        %s327 = ssub.s32 %s18, 1
        %s328 = sand.u32 %s23, 1
        %s329 = scalar_lea.sflag [#allocation4], %s328
        %s330 = sand.u32 %s45, 1
        %s331 = smul.addr %s330, 16
        %s332 = scalar_lea.vmem [#allocation3], %s331
        // Predicated region
        $region49: #{tpu_custom_call.1} parent=47 // pred_check
          %p333 = pneg %p58
        $region50: #{tpu_custom_call.1} parent=47 // pred_check_branch
          %335 = sbr.rel (%p333) target = $region52
        $region51: #{tpu_custom_call.1} parent=47 // pred_region
          %336 = dma.done %s329, 256
        $region52: #{tpu_custom_call.1} parent=47 // pred_fallthru
          _
        // Predicated region
        $region53: #{tpu_custom_call.1} parent=47 // pred_check
          %p337 = pneg %p84
        $region54: #{tpu_custom_call.1} parent=47 // pred_check_branch
          %339 = sbr.rel (%p337) target = $region56
        $region55: #{tpu_custom_call.1} parent=47 // pred_region
          %340 = dma.done [#allocation7], 256
        $region56: #{tpu_custom_call.1} parent=47 // pred_fallthru
          _
        %s341 = sand.u32 %s23, 1
        %s342 = scalar_lea.sflag [#allocation4], %s341
        %s343 = sand.u32 %s118, 1
        %s344 = smul.addr %s343, 64
        %s345 = scalar_lea.vmem [#allocation8], %s344
        // Predicated region
        $region57: #{tpu_custom_call.1} parent=47 // pred_check
          %p346 = pneg %p131
        $region58: #{tpu_custom_call.1} parent=47 // pred_check_branch
          %348 = sbr.rel (%p346) target = $region60
        $region59: #{tpu_custom_call.1} parent=47 // pred_region
          %349 = dma.done %s342, 1024
        $region60: #{tpu_custom_call.1} parent=47 // pred_fallthru
          _
        // Predicated region
        $region61: #{tpu_custom_call.1} parent=47 // pred_check
          %p350 = pneg %p173
        $region62: #{tpu_custom_call.1} parent=47 // pred_check_branch
          %352 = sbr.rel (%p350) target = $region64
        $region63: #{tpu_custom_call.1} parent=47 // pred_region
          %353 = dma.done [#allocation7], 2048
        $region64: #{tpu_custom_call.1} parent=47 // pred_fallthru
          _
        %s354 = sand.u32 %s23, 1
        %s355 = scalar_lea.sflag [#allocation4], %s354
        %s356 = sand.u32 %s45, 1
        %s357 = smul.addr %s356, 16
        %s358 = scalar_lea.vmem [#allocation3], %s357
        %p359 = pneg %p58
        %p360 = pneg %p55
        %p361 = pneg %p84
        %p362 = pneg %p81
        %p363 = pneg %p105
        %p364 = pneg %p102
        %s365 = sand.u32 %s23, 1
        %s366 = scalar_lea.sflag [#allocation4], %s365
        %s367 = sand.u32 %s118, 1
        %s368 = smul.addr %s367, 64
        %s369 = scalar_lea.vmem [#allocation8], %s368
        %p370 = pneg %p131
        %p371 = pneg %p128
        %p372 = pneg %p152
        %p373 = pneg %p149
        %p374 = pneg %p173
        %p375 = pneg %p170
        %p376 = pneg %p194
        %p377 = pneg %p191
        %p378 = pneg %p220
        %p379 = pneg %p217
        %s380 = smul.u32 2, %s27
        %s381 = smul.u32 2, %s27
        %s382 = smul.u32 16, %s28
        %s383 = smul.u32 2, %s27
        %p385 = scmp.eq.s32.totalorder %s28, 0
        // Predicated region
        $region65: #{tpu_custom_call.1} parent=47 // pred_check
          %p386 = pneg %p385
        $region66: #{tpu_custom_call.1} parent=47 // pred_check_branch
          %388 = sbr.rel (%p386) target = $region68
        $region67: #{tpu_custom_call.1} parent=47 // pred_region
          %389 = vst [vmem:[#allocation2] sm:$0xff] 0.0
          %390 = vst [vmem:[#allocation2 + $0x8] sm:$0xff] 0.0
        $region68: #{tpu_custom_call.1} parent=47 // pred_fallthru
          _
        %v391 = vld [vmem:[%s332] sm:$0xff]
        %v392 = vld [vmem:[%s332 + $0x8] sm:$0xff]
        %v393 = vadd.f32 %v391, 1.0
        %v394 = vadd.f32 %v392, 1.0
        %v395 = vlog2.pop %v393
        %v396 = vmul.f32 %v395, 0.6931472
        %v397 = vlog2.pop %v394
        %v398 = vmul.f32 %v397, 0.6931472
        %v399 = vld [vmem:[#allocation2] sm:$0xff]
        %v400 = vld [vmem:[#allocation2 + $0x8] sm:$0xff]
        %v401 = vpack.c.bf16 %v398, %v396
        %v402 = vld [vmem:[%s345] sm:$0xf]
        %v403 = vld [vmem:[%s345 + $0x4] sm:$0xf]
        %v404 = vld [vmem:[%s345 + $0x8] sm:$0xf]
        %v405 = vld [vmem:[%s345 + $0xc] sm:$0xf]
        %v406 = vld [vmem:[%s345 + $0x10] sm:$0xf]
        %v407 = vld [vmem:[%s345 + $0x14] sm:$0xf]
        %v408 = vld [vmem:[%s345 + $0x18] sm:$0xf]
        %v409 = vld [vmem:[%s345 + $0x1c] sm:$0xf]
        %v410 = vld [vmem:[%s345 + $0x20] sm:$0xf]
        %v411 = vld [vmem:[%s345 + $0x24] sm:$0xf]
        %v412 = vld [vmem:[%s345 + $0x28] sm:$0xf]
        %v413 = vld [vmem:[%s345 + $0x2c] sm:$0xf]
        %v414 = vld [vmem:[%s345 + $0x30] sm:$0xf]
        %v415 = vld [vmem:[%s345 + $0x34] sm:$0xf]
        %v416 = vld [vmem:[%s345 + $0x38] sm:$0xf]
        %v417 = vld [vmem:[%s345 + $0x3c] sm:$0xf]
        %v434 = vunpack.c.l.b16 %v402
        %v435 = vunpack.c.l.b16 %v403
        %v436 = vunpack.c.l.b16 %v404
        %v437 = vunpack.c.l.b16 %v405
        %v438 = vunpack.c.l.b16 %v406
        %v439 = vunpack.c.l.b16 %v407
        %v440 = vunpack.c.l.b16 %v408
        %v441 = vunpack.c.l.b16 %v409
        %v442 = vunpack.c.l.b16 %v410
        %v443 = vunpack.c.l.b16 %v411
        %v444 = vunpack.c.l.b16 %v412
        %v445 = vunpack.c.l.b16 %v413
        %v446 = vunpack.c.l.b16 %v414
        %v447 = vunpack.c.l.b16 %v415
        %v448 = vunpack.c.l.b16 %v416
        %v449 = vunpack.c.l.b16 %v417
        %v450 = vpack.c.b16 %v435, %v434
        %v451 = vpack.c.b16 %v437, %v436
        %v452 = vpack.c.b16 %v439, %v438
        %v453 = vpack.c.b16 %v441, %v440
        %v454 = vpack.c.b16 %v443, %v442
        %v455 = vpack.c.b16 %v445, %v444
        %v456 = vpack.c.b16 %v447, %v446
        %v457 = vpack.c.b16 %v449, %v448
        %466 = vmatprep.subr.bf16.mxu0 0
        %467 = vmatpush1.bf16.msra.mxu0 %v450
        %468 = vmatprep.subr.bf16.mxu0 0
        %469 = vmatpush1.bf16.msra.mxu0 %v451
        %470 = vmatprep.subr.bf16.mxu0 0
        %471 = vmatpush1.bf16.msra.mxu0 %v452
        %472 = vmatprep.subr.bf16.mxu0 0
        %473 = vmatpush1.bf16.msra.mxu0 %v453
        %474 = vmatprep.subr.bf16.mxu0 0
        %475 = vmatpush1.bf16.msra.mxu0 %v454
        %476 = vmatprep.subr.bf16.mxu0 0
        %477 = vmatpush1.bf16.msra.mxu0 %v455
        %478 = vmatprep.subr.bf16.mxu0 0
        %479 = vmatpush1.bf16.msra.mxu0 %v456
        %480 = vmatprep.subr.bf16.mxu0 0
        %481 = vmatpush1.bf16.msra.mxu0 %v457
        %482 = vmatprep.subr.bf16.mxu0 0
        %483 = vmatpush1.bf16.msra.mxu0 0
        %484 = vmatprep.subr.bf16.mxu0 0
        %485 = vmatpush1.bf16.msra.mxu0 0
        %486 = vmatprep.subr.bf16.mxu0 0
        %487 = vmatpush1.bf16.msra.mxu0 0
        %488 = vmatprep.subr.bf16.mxu0 0
        %489 = vmatpush1.bf16.msra.mxu0 0
        %490 = vmatprep.subr.bf16.mxu0 0
        %491 = vmatpush1.bf16.msra.mxu0 0
        %492 = vmatprep.subr.bf16.mxu0 0
        %493 = vmatpush1.bf16.msra.mxu0 0
        %494 = vmatprep.subr.bf16.mxu0 0
        %495 = vmatpush1.bf16.msra.mxu0 0
        %496 = vmatprep.subr.bf16.mxu0 0
        %497 = vmatpush1.bf16.msra.mxu0 0
        %498 = vmatprep.mubr.bf16.mxu0 0
        %499 = vmatmul.mubr.bf16.gmra.mrb[0].mxu0 %v401
        %v500 = vpop.f32.mrb[0].mxu0
        %v501 = vadd.f32 0.0, %v500
        %v502 = vpop.f32.mrb[0].mxu0
        %v503 = vpop.f32.mrb[0].mxu0
        %v504 = vadd.f32 0.0, %v503
        %v505 = vpop.f32.mrb[0].mxu0
        %506 = vdwg.mxu0
        %v507 = vadd.f32 %v399, %v501
        %v508 = vadd.f32 %v400, %v504
        %509 = vst [vmem:[#allocation2] sm:$0xff] %v507
        %510 = vst [vmem:[#allocation2 + $0x8] sm:$0xff] %v508
        %p511 = scmp.eq.s32.totalorder %s28, 1
        // Predicated region
        $region69: #{tpu_custom_call.1} parent=47 // pred_check
          %p512 = pneg %p511
        $region70: #{tpu_custom_call.1} parent=47 // pred_check_branch
          %514 = sbr.rel (%p512) target = $region72
        $region71: #{tpu_custom_call.1} parent=47 // pred_region
          %v515 = vld [vmem:[#allocation2] sm:$0xff]
          %v516 = vld [vmem:[#allocation2 + $0x8] sm:$0xff]
          %v517 = vld [vmem:[%s4] sm:$0x1]
          %v519 = vlaneseq
          %v520 = vshrl.u32 %v519, 7
          %v521 = vsub.s32 0, %v520
          %v522 = vrot.slane %v517, %v521
          %v524 = vadd.f32 %v515, %v522
          %v525 = vadd.f32 %v516, %v522
          %v526 = vmax.f32 %v524, 0.0
          %v527 = vmax.f32 %v525, 0.0
          %v528 = vpack.c.bf16 %v527, %v526
          %v529 = vld [vmem:[#allocation9] sm:$0xff]
          %v530 = vld [vmem:[#allocation9 + $0x8] sm:$0xff]
          %v531 = vld [vmem:[#allocation9 + $0x10] sm:$0xff]
          %v532 = vld [vmem:[#allocation9 + $0x18] sm:$0xff]
          %v533 = vld [vmem:[#allocation9 + $0x20] sm:$0xff]
          %v534 = vld [vmem:[#allocation9 + $0x28] sm:$0xff]
          %v535 = vld [vmem:[#allocation9 + $0x30] sm:$0xff]
          %v536 = vld [vmem:[#allocation9 + $0x38] sm:$0xff]
          %v537 = vld [vmem:[#allocation9 + $0x40] sm:$0xff]
          %v538 = vld [vmem:[#allocation9 + $0x48] sm:$0xff]
          %v539 = vld [vmem:[#allocation9 + $0x50] sm:$0xff]
          %v540 = vld [vmem:[#allocation9 + $0x58] sm:$0xff]
          %v541 = vld [vmem:[#allocation9 + $0x60] sm:$0xff]
          %v542 = vld [vmem:[#allocation9 + $0x68] sm:$0xff]
          %v543 = vld [vmem:[#allocation9 + $0x70] sm:$0xff]
          %v544 = vld [vmem:[#allocation9 + $0x78] sm:$0xff]
          %v545 = vld [vmem:[%s6] sm:$0x3]
          %v547 = vlaneseq
          %v548 = vshrl.u32 %v547, 7
          %v549 = vsub.s32 0, %v548
          %v550 = vrot.slane %v545, %v549
          %v551 = vlaneseq
          %v552 = vshrl.u32 %v551, 7
          %v553 = vsub.s32 1, %v552
          %v554 = vrot.slane %v545, %v553
          %v573 = vunpack.c.l.b16 %v529
          %v574 = vunpack.c.h.b16 %v529
          %v575 = vunpack.c.l.b16 %v530
          %v576 = vunpack.c.h.b16 %v530
          %v577 = vunpack.c.l.b16 %v531
          %v578 = vunpack.c.h.b16 %v531
          %v579 = vunpack.c.l.b16 %v532
          %v580 = vunpack.c.h.b16 %v532
          %v581 = vunpack.c.l.b16 %v533
          %v582 = vunpack.c.h.b16 %v533
          %v583 = vunpack.c.l.b16 %v534
          %v584 = vunpack.c.h.b16 %v534
          %v585 = vunpack.c.l.b16 %v535
          %v586 = vunpack.c.h.b16 %v535
          %v587 = vunpack.c.l.b16 %v536
          %v588 = vunpack.c.h.b16 %v536
          %v589 = vunpack.c.l.b16 %v537
          %v590 = vunpack.c.h.b16 %v537
          %v591 = vunpack.c.l.b16 %v538
          %v592 = vunpack.c.h.b16 %v538
          %v593 = vunpack.c.l.b16 %v539
          %v594 = vunpack.c.h.b16 %v539
          %v595 = vunpack.c.l.b16 %v540
          %v596 = vunpack.c.h.b16 %v540
          %v597 = vunpack.c.l.b16 %v541
          %v598 = vunpack.c.h.b16 %v541
          %v599 = vunpack.c.l.b16 %v542
          %v600 = vunpack.c.h.b16 %v542
          %v601 = vunpack.c.l.b16 %v543
          %v602 = vunpack.c.h.b16 %v543
          %v603 = vunpack.c.l.b16 %v544
          %v604 = vunpack.c.h.b16 %v544
          %v605 = vpack.c.b16 %v575, %v573
          %v606 = vpack.c.b16 %v576, %v574
          %v607 = vpack.c.b16 %v579, %v577
          %v608 = vpack.c.b16 %v580, %v578
          %v609 = vpack.c.b16 %v583, %v581
          %v610 = vpack.c.b16 %v584, %v582
          %v611 = vpack.c.b16 %v587, %v585
          %v612 = vpack.c.b16 %v588, %v586
          %v613 = vpack.c.b16 %v591, %v589
          %v614 = vpack.c.b16 %v592, %v590
          %v615 = vpack.c.b16 %v595, %v593
          %v616 = vpack.c.b16 %v596, %v594
          %v617 = vpack.c.b16 %v599, %v597
          %v618 = vpack.c.b16 %v600, %v598
          %v619 = vpack.c.b16 %v603, %v601
          %v620 = vpack.c.b16 %v604, %v602
          %637 = vmatprep.subr.bf16.mxu0 %v606
          %638 = vmatpush1.bf16.msra.mxu0 %v605
          %639 = vmatprep.subr.bf16.mxu0 %v608
          %640 = vmatpush1.bf16.msra.mxu0 %v607
          %641 = vmatprep.subr.bf16.mxu0 %v610
          %642 = vmatpush1.bf16.msra.mxu0 %v609
          %643 = vmatprep.subr.bf16.mxu0 %v612
          %644 = vmatpush1.bf16.msra.mxu0 %v611
          %645 = vmatprep.subr.bf16.mxu0 %v614
          %646 = vmatpush1.bf16.msra.mxu0 %v613
          %647 = vmatprep.subr.bf16.mxu0 %v616
          %648 = vmatpush1.bf16.msra.mxu0 %v615
          %649 = vmatprep.subr.bf16.mxu0 %v618
          %650 = vmatpush1.bf16.msra.mxu0 %v617
          %651 = vmatprep.subr.bf16.mxu0 %v620
          %652 = vmatpush1.bf16.msra.mxu0 %v619
          %653 = vmatprep.subr.bf16.mxu0 0
          %654 = vmatpush1.bf16.msra.mxu0 0
          %655 = vmatprep.subr.bf16.mxu0 0
          %656 = vmatpush1.bf16.msra.mxu0 0
          %657 = vmatprep.subr.bf16.mxu0 0
          %658 = vmatpush1.bf16.msra.mxu0 0
          %659 = vmatprep.subr.bf16.mxu0 0
          %660 = vmatpush1.bf16.msra.mxu0 0
          %661 = vmatprep.subr.bf16.mxu0 0
          %662 = vmatpush1.bf16.msra.mxu0 0
          %663 = vmatprep.subr.bf16.mxu0 0
          %664 = vmatpush1.bf16.msra.mxu0 0
          %665 = vmatprep.subr.bf16.mxu0 0
          %666 = vmatpush1.bf16.msra.mxu0 0
          %667 = vmatprep.subr.bf16.mxu0 0
          %668 = vmatpush1.bf16.msra.mxu0 0
          %669 = vmatprep.mubr.bf16.mxu0 0
          %670 = vmatmul.mubr.bf16.gmra.mrb[0].mxu0 %v528
          %v671 = vpop.f32.mrb[0].mxu0
          %v672 = vadd.f32 %v550, %v671
          %v673 = vpop.f32.mrb[0].mxu0
          %v674 = vadd.f32 %v554, %v673
          %v675 = vpop.f32.mrb[0].mxu0
          %v676 = vadd.f32 %v550, %v675
          %v677 = vpop.f32.mrb[0].mxu0
          %v678 = vadd.f32 %v554, %v677
          %679 = vdwg.mxu0
          %v680 = vmul.f32 %v674, 1.442695
          %v681 = vpow.pop %v680
          %v682 = vmul.f32 %v678, 1.442695
          %v683 = vpow.pop %v682
          %v684 = vadd.f32 %v681, 0.0001
          %v685 = vadd.f32 %v683, 0.0001
          %v686 = vrsqrt.pop %v684
          %v687 = vmul.f32 %v684, %v686
          %vm688 = vcmp.eq.f32.partialorder %v684, inf
          %v689 = vsel %vm688, %v684, %v687
          %vm690 = vcmp.eq.f32.partialorder %v684, 0.0
          %v691 = vand.u32 %v684, 2147483648
          %v692 = vsel %vm690, %v691, %v689
          %v693 = vrsqrt.pop %v685
          %v694 = vmul.f32 %v685, %v693
          %vm695 = vcmp.eq.f32.partialorder %v685, inf
          %v696 = vsel %vm695, %v685, %v694
          %vm697 = vcmp.eq.f32.partialorder %v685, 0.0
          %v698 = vand.u32 %v685, 2147483648
          %v699 = vsel %vm697, %v698, %v696
          %v700 = vld [vmem:[#allocation6] sm:$0xff]
          %v701 = vld [vmem:[#allocation6 + $0x8] sm:$0xff]
          %v702 = vmul.f32 %v692, %v700
          %v703 = vmul.f32 %v699, %v701
          %v704 = vadd.f32 %v672, %v702
          %v705 = vadd.f32 %v676, %v703
          %v706 = vld [vmem:[%s2] sm:$0x1]
          %v707 = vld [vmem:[%s2 + $0x1] sm:$0x1]
          %v708 = vlog2.pop %v684
          %v709 = vmul.f32 %v708, 0.6931472
          %v710 = vlog2.pop %v685
          %v711 = vmul.f32 %v710, 0.6931472
          %v712 = vmul.f32 %v709, -0.5
          %v713 = vmul.f32 %v711, -0.5
          %v714 = vmul.f32 %v672, %v672
          %v715 = vmul.f32 %v676, %v676
          %v716 = vadd.f32 %v684, %v714
          %v717 = vadd.f32 %v685, %v715
          %v718 = vmul.f32 %v716, 0.5
          %v719 = vmul.f32 %v717, 0.5
          %v720 = vadd.f32 %v712, %v718
          %v721 = vadd.f32 %v713, %v719
          %v722 = vsub.f32 %v720, 0.5
          %v723 = vsub.f32 %v721, 0.5
          %v724 = vlaneseq
          %v725 = vshrl.u32 %v724, 7
          %v726 = vsub.s32 0, %v725
          %v727 = vrot.slane %v706, %v726
          %v728 = vmul.f32 %v722, %v727
          %v729 = vmul.f32 %v723, %v727
          %730 = vadd.xlane.f32.xlu0 %v728
          %v731 = vpop.xlane.xlu0 %730
          %732 = vadd.xlane.f32.xlu0 %v729
          %v733 = vpop.xlane.xlu0 %732
          %v734 = vlaneseq
          %v735 = vshrl.u32 %v734, 7
          %v736 = vsub.s32 0, %v735
          %v737 = vrot.slane %v707, %v736
          %v738 = vmul.f32 %v731, %v737
          %v739 = vmul.f32 %v733, %v737
          %v740 = vadd.f32 %v672, %v738
          %v741 = vadd.f32 %v676, %v739
          %742 = vst [vmem:[#allocation10] sm:$0xff] %v740
          %743 = vst [vmem:[#allocation10 + $0x8] sm:$0xff] %v684
          %744 = vst [vmem:[#allocation10 + $0x10] sm:$0xff] %v704
          %745 = vst [vmem:[#allocation10 + $0x18] sm:$0xff] %v741
          %746 = vst [vmem:[#allocation10 + $0x20] sm:$0xff] %v685
          %747 = vst [vmem:[#allocation10 + $0x28] sm:$0xff] %v705
        $region72: #{tpu_custom_call.1} parent=47 // pred_fallthru
          _
        // Predicated region
        $region73: #{tpu_custom_call.1} parent=47 // pred_check
          %p748 = pneg %p217
        $region74: #{tpu_custom_call.1} parent=47 // pred_check_branch
          %750 = sbr.rel (%p748) target = $region76
        $region75: #{tpu_custom_call.1} parent=47 // pred_region
          %s751 = smul.u32 2, %s27
          %s753 = ssub.s32 768, 768
          %754 = vsyncadd [#allocation5], %s753
          %s755 = smul.addr %s751, 3
          %s756 = smul.addr %s755, 128
          %s757 = scalar_lea.hbm %s7, %s756
          %s758 = sshll.u32 [#allocation10], 4
          %s759 = int_to_ptr.vmem [resolvable:$true] %s758
          %764 = dma.vmem_to_hbm [thread:$0]  %s759, 768, %s757, [#allocation5], 384, 384, 24
        $region76: #{tpu_custom_call.1} parent=47 // pred_fallthru
          _
        // Predicated region
        $region77: #{tpu_custom_call.1} parent=47 // pred_check
          %p765 = pneg %p217
        $region78: #{tpu_custom_call.1} parent=47 // pred_check_branch
          %767 = sbr.rel (%p765) target = $region80
        $region79: #{tpu_custom_call.1} parent=47 // pred_region
          %768 = dma.done [#allocation5], 768
        $region80: #{tpu_custom_call.1} parent=47 // pred_fallthru
          _
      $region48: #{tpu_custom_call.1} parent=5 // pred_fallthru
        _
      %p769 = scmp.le.s32.totalorder 2, %s18
      // Predicated region
      $region81: #{tpu_custom_call.1} parent=5 // pred_check
        %p770 = pneg %p769
      $region82: #{tpu_custom_call.1} parent=5 // pred_check_branch
        %772 = sbr.rel (%p770) target = $region84
      $region83: #{tpu_custom_call.1} parent=5 // pred_region
        %s773 = ssub.s32 %s18, 2
      $region84: #{tpu_custom_call.1} parent=5 // pred_fallthru
        _
    $region6: #{tpu_custom_call.1} parent=1 // loop_footer
      %s22 = sadd.s32 1, %s18
    $region7: #{tpu_custom_call.1} parent=1 // loop_footer_branch
      %17 = sbr.rel target = $region3
    $region8: #{tpu_custom_call.1} parent=1 // loop_exit
      _
    %774 = vsyncpa [#allocation4], 1
    %s775 = scalar_lea.sflag [#allocation4], 1
    %776 = vsyncpa %s775, 1
    %777 = vsyncpa [#allocation7], 1
    %778 = vsyncpa [#allocation5], 1
    %s779 = scalar_lea.sflag [#allocation5], 1
    %780 = vsyncpa %s779, 1

</llo_original>
